<compile_context>
chip_gen: v5e
topology: v5e:2x2
jax: 0.10.0
libtpu: 0.0.40
codegen_flags: <defaults>
</compile_context>

<pallas_src>
import functools

import jax
import jax.numpy as jnp
import numpy as np
from jax.experimental import pallas as pl
from jax.experimental.pallas import tpu as pltpu


def _layernorm(v, gamma, beta, eps=1e-5):
    mu = jnp.mean(v, axis=-1, keepdims=True)
    var = jnp.mean((v - mu) ** 2, axis=-1, keepdims=True)
    return (v - mu) * jax.lax.rsqrt(var + eps) * gamma + beta


def _swap_seq_head(t):
    """(Bt, F, H, hd) <-> (Bt, H, F, hd); minor (lane) dim untouched."""
    return jnp.swapaxes(t, 1, 2)


def encoder_layer_kernel(x_ref,
                         wqkv_ref, bqkv_ref, wp_ref, bp_ref,
                         g1_ref, be1_ref,
                         w1_ref, cb1_ref, w2_ref, cb2_ref,
                         g2_ref, be2_ref,
                         o_ref,
                         *, batch_block, n_heads, head_dim, compute_dtype):
    R, D = x_ref.shape                       # row slab: R = Bt * F
    Bt, H, hd = batch_block, n_heads, head_dim
    F = R // Bt
    G = Bt * H                               # combined (batch, head) dim

    x = x_ref[...].astype(jnp.float32)       # (R, D)

    # ---- attention branch: x + proj(MHA(norm1(x))) --------------------------
    xn = _layernorm(x, g1_ref[0], be1_ref[0])

    # Fused QKV: one MXU push (R, D) x (D, 3D), one fused bias add.
    qkv = jnp.dot(xn.astype(compute_dtype), wqkv_ref[...].astype(compute_dtype),
                  preferred_element_type=jnp.float32) + bqkv_ref[0]
    scale = 1.0 / (hd ** 0.5)
    q = qkv[:, :D] * scale                   # fold 1/sqrt(hd) into q once
    k = qkv[:, D:2 * D]
    v = qkv[:, 2 * D:]

    def to_heads(t):                         # (R, D) -> (G, F, hd) head-major
        t = t.reshape(Bt, F, H, hd)
        return _swap_seq_head(t).reshape(G, F, hd)

    qh, kh, vh = to_heads(q), to_heads(k), to_heads(v)

    # Single batched contraction over all (batch, head) pairs.
    s = jnp.einsum("gqd,gkd->gqk",
                   qh.astype(compute_dtype), kh.astype(compute_dtype),
                   preferred_element_type=jnp.float32)          # (G, F, F)
    s = s - jnp.max(s, axis=-1, keepdims=True)
    p = jnp.exp(s)
    p = p * pl.reciprocal(jnp.sum(p, axis=-1, keepdims=True), approx=True)
    a = jnp.einsum("gqk,gkd->gqd",
                   p.astype(compute_dtype), vh.astype(compute_dtype),
                   preferred_element_type=jnp.float32)          # (G, F, hd)
    attn = _swap_seq_head(a.reshape(Bt, H, F, hd)).reshape(R, D)

    attn = jnp.dot(attn.astype(compute_dtype), wp_ref[...].astype(compute_dtype),
                   preferred_element_type=jnp.float32) + bp_ref[0]
    x = x + attn

    # ---- FFN branch: x + conv2(relu(conv1(norm2(x)))) (kernel_size=1 convs) --
    y = _layernorm(x, g2_ref[0], be2_ref[0])
    y = jnp.dot(y.astype(compute_dtype), w1_ref[...].astype(compute_dtype),
                preferred_element_type=jnp.float32) + cb1_ref[0]
    y = jnp.maximum(y, 0.0)                                     # relu
    y = jnp.dot(y.astype(compute_dtype), w2_ref[...].astype(compute_dtype),
                preferred_element_type=jnp.float32) + cb2_ref[0]

    o_ref[...] = (x + y).astype(o_ref.dtype)


def encoder_layer(x, params, *, n_heads, batch_block=None,
                  compute_dtype=jnp.bfloat16):
    B, F, D = x.shape
    d_ff = params["w1"].shape[1]
    head_dim = D // n_heads
    Bt = B if batch_block is None else batch_block
    assert B % Bt == 0, "batch_block must divide batch"
    Rt = Bt * F
    if Bt != B:
        assert Rt % 8 == 0, "row block must be sublane aligned when tiling batch"

    # Fuse Q/K/V weights & biases -> a single (D, 3D) matmul inside the kernel.
    wqkv = jnp.concatenate([params["wq"], params["wk"], params["wv"]], axis=1)
    bqkv = jnp.concatenate([params["bq"], params["bk"], params["bv"]], axis=1)

    xf = x.reshape(B * F, D)                 # free row-major reshape in wrapper

    full = lambda shape: pl.BlockSpec(shape, lambda i: (0, 0))
    weight_specs = [
        full((D, 3 * D)), full((1, 3 * D)),  # fused qkv W, b
        full((D, D)), full((1, D)),          # proj W, b
        full((1, D)), full((1, D)),          # norm1 gamma, beta
        full((D, d_ff)), full((1, d_ff)),    # conv1 W, b
        full((d_ff, D)), full((1, D)),       # conv2 W, b
        full((1, D)), full((1, D)),          # norm2 gamma, beta
    ]

    kernel = functools.partial(encoder_layer_kernel, batch_block=Bt,
                               n_heads=n_heads, head_dim=head_dim,
                               compute_dtype=compute_dtype)

    out = pl.pallas_call(
        kernel,
        out_shape=jax.ShapeDtypeStruct((B * F, D), x.dtype),
        grid_spec=pltpu.PrefetchScalarGridSpec(
            num_scalar_prefetch=0,
            grid=(B // Bt,),
            in_specs=[pl.BlockSpec((Rt, D), lambda i: (i, 0))] + weight_specs,
            out_specs=pl.BlockSpec((Rt, D), lambda i: (i, 0)),
        ),
        compiler_params=pltpu.CompilerParams(
            dimension_semantics=("parallel",),
            vmem_limit_bytes=32 * 1024 * 1024),
    )(xf, wqkv, bqkv,
      params["wp"], params["bp"],
      params["g1"], params["be1"],
      params["w1"], params["cb1"], params["w2"], params["cb2"],
      params["g2"], params["be2"])
    return out.reshape(B, F, D)


def reference_encoder_layer(x, p, *, n_heads):
    B, F, D = x.shape
    hd = D // n_heads
    scale = 1.0 / (hd ** 0.5)

    def ln(v, g, b):
        mu = jnp.mean(v, axis=-1, keepdims=True)
        var = jnp.mean((v - mu) ** 2, axis=-1, keepdims=True)
        return (v - mu) / jnp.sqrt(var + 1e-5) * g[0] + b[0]

    xn = ln(x, p["g1"], p["be1"])
    q = xn @ p["wq"] + p["bq"][0]
    k = xn @ p["wk"] + p["bk"][0]
    v = xn @ p["wv"] + p["bv"][0]
    q = q.reshape(B, F, n_heads, hd).transpose(0, 2, 1, 3)
    k = k.reshape(B, F, n_heads, hd).transpose(0, 2, 1, 3)
    v = v.reshape(B, F, n_heads, hd).transpose(0, 2, 1, 3)
    attn = jax.nn.softmax(q @ jnp.swapaxes(k, -2, -1) * scale, axis=-1)
    a = (attn @ v).transpose(0, 2, 1, 3).reshape(B, F, D)
    a = a @ p["wp"] + p["bp"][0]
    x = x + a
    y = ln(x, p["g2"], p["be2"])
    y = jnp.maximum(y @ p["w1"] + p["cb1"][0], 0.0)
    y = y @ p["w2"] + p["cb2"][0]
    return x + y


if __name__ == "__main__":
    # Small shapes consistent with the module: d_model=32, n_heads=8, seq=8, batch=2
    B, F, D = 2, 8, 32
    n_heads = 8
    d_ff = 4 * D

    key = jax.random.PRNGKey(0)
    keys = jax.random.split(key, 20)

    def rnd(k, shape, s=0.1):
        return jax.random.normal(k, shape, dtype=jnp.float32) * s

    # Linear weights stored pre-transposed (in, out) so the kernel does x @ W + b.
    params = {
        "wq": rnd(keys[0], (D, D)), "bq": rnd(keys[1], (1, D)),
        "wk": rnd(keys[2], (D, D)), "bk": rnd(keys[3], (1, D)),
        "wv": rnd(keys[4], (D, D)), "bv": rnd(keys[5], (1, D)),
        "wp": rnd(keys[6], (D, D)), "bp": rnd(keys[7], (1, D)),
        "g1": 1.0 + rnd(keys[8], (1, D)), "be1": rnd(keys[9], (1, D)),
        # conv1: Conv1d(D, d_ff, 1) -> weight (d_ff, D, 1) == linear (D, d_ff) transposed
        "w1": rnd(keys[10], (D, d_ff)), "cb1": rnd(keys[11], (1, d_ff)),
        # conv2: Conv1d(d_ff, D, 1) -> weight (D, d_ff, 1) == linear (d_ff, D) transposed
        "w2": rnd(keys[12], (d_ff, D)), "cb2": rnd(keys[13], (1, D)),
        "g2": 1.0 + rnd(keys[14], (1, D)), "be2": rnd(keys[15], (1, D)),
    }

    x = jax.random.normal(keys[16], (B, F, D), dtype=jnp.float32)

    ref = jax.block_until_ready(reference_encoder_layer(x, params, n_heads=n_heads))

    # f32 matmul path: tight tolerance.
    out_f32 = encoder_layer(x, params, n_heads=n_heads, compute_dtype=jnp.float32)
    out_f32 = jax.block_until_ready(out_f32)
    np.testing.assert_allclose(np.asarray(out_f32), np.asarray(ref),
                               rtol=2e-3, atol=2e-3)

    # bf16 matmul-operand path (f32 accumulation): looser tolerance.
    out_bf16 = encoder_layer(x, params, n_heads=n_heads, compute_dtype=jnp.bfloat16)
    out_bf16 = jax.block_until_ready(out_bf16)
    np.testing.assert_allclose(np.asarray(out_bf16), np.asarray(ref),
                               rtol=2e-2, atol=2e-2)

    print("KERNEL_OK")
</pallas_src>

<mosaic_0001>
module attributes {stable_mosaic.version = 11 : i64} {
  func.func @encoder_layer_kernel(%arg0: i32, %arg1: memref<16x32xf32, #tpu.memory_space<vmem>>, %arg2: memref<32x96xf32, #tpu.memory_space<vmem>>, %arg3: memref<1x96xf32, #tpu.memory_space<vmem>>, %arg4: memref<32x32xf32, #tpu.memory_space<vmem>>, %arg5: memref<1x32xf32, #tpu.memory_space<vmem>>, %arg6: memref<1x32xf32, #tpu.memory_space<vmem>>, %arg7: memref<1x32xf32, #tpu.memory_space<vmem>>, %arg8: memref<32x128xf32, #tpu.memory_space<vmem>>, %arg9: memref<1x128xf32, #tpu.memory_space<vmem>>, %arg10: memref<128x32xf32, #tpu.memory_space<vmem>>, %arg11: memref<1x32xf32, #tpu.memory_space<vmem>>, %arg12: memref<1x32xf32, #tpu.memory_space<vmem>>, %arg13: memref<1x32xf32, #tpu.memory_space<vmem>>, %arg14: memref<16x32xf32, #tpu.memory_space<vmem>>) attributes {dimension_semantics = [#tpu.dimension_semantics<parallel>], iteration_bounds = array<i64: 1>, scalar_prefetch = 0 : i64, scratch_operands = 0 : i64, tpu.core_type = #tpu.core_type<tc>, window_params = [{transform_indices = @transform_0, window_bounds = array<i64: 16, 32>}, {pipeline_mode = #tpu.pipeline_mode<synchronous>, transform_indices = @transform_1, window_bounds = array<i64: 32, 96>}, {pipeline_mode = #tpu.pipeline_mode<synchronous>, transform_indices = @transform_2, window_bounds = array<i64: 1, 96>}, {pipeline_mode = #tpu.pipeline_mode<synchronous>, transform_indices = @transform_3, window_bounds = array<i64: 32, 32>}, {pipeline_mode = #tpu.pipeline_mode<synchronous>, transform_indices = @transform_4, window_bounds = array<i64: 1, 32>}, {pipeline_mode = #tpu.pipeline_mode<synchronous>, transform_indices = @transform_5, window_bounds = array<i64: 1, 32>}, {pipeline_mode = #tpu.pipeline_mode<synchronous>, transform_indices = @transform_6, window_bounds = array<i64: 1, 32>}, {pipeline_mode = #tpu.pipeline_mode<synchronous>, transform_indices = @transform_7, window_bounds = array<i64: 32, 128>}, {pipeline_mode = #tpu.pipeline_mode<synchronous>, transform_indices = @transform_8, window_bounds = array<i64: 1, 128>}, {pipeline_mode = #tpu.pipeline_mode<synchronous>, transform_indices = @transform_9, window_bounds = array<i64: 128, 32>}, {pipeline_mode = #tpu.pipeline_mode<synchronous>, transform_indices = @transform_10, window_bounds = array<i64: 1, 32>}, {pipeline_mode = #tpu.pipeline_mode<synchronous>, transform_indices = @transform_11, window_bounds = array<i64: 1, 32>}, {pipeline_mode = #tpu.pipeline_mode<synchronous>, transform_indices = @transform_12, window_bounds = array<i64: 1, 32>}, {transform_indices = @transform_13, window_bounds = array<i64: 16, 32>}]} {
    %c0 = arith.constant 0 : index
    %c0_0 = arith.constant 0 : index
    %0 = vector.load %arg1[%c0, %c0_0] : memref<16x32xf32, #tpu.memory_space<vmem>>, vector<16x32xf32>
    %c0_1 = arith.constant 0 : index
    %c0_2 = arith.constant 0 : index
    %1 = vector.load %arg6[%c0_1, %c0_2] : memref<1x32xf32, #tpu.memory_space<vmem>>, vector<1x32xf32>
    %2 = vector.shape_cast %1 : vector<1x32xf32> to vector<32xf32>
    %c0_3 = arith.constant 0 : index
    %c0_4 = arith.constant 0 : index
    %3 = vector.load %arg7[%c0_3, %c0_4] : memref<1x32xf32, #tpu.memory_space<vmem>>, vector<1x32xf32>
    %4 = vector.shape_cast %3 : vector<1x32xf32> to vector<32xf32>
    %cst = arith.constant dense<0.000000e+00> : vector<16xf32>
    %5 = vector.multi_reduction <add>, %0, %cst [1] : vector<16x32xf32> to vector<16xf32>
    %6 = vector.shape_cast %5 : vector<16xf32> to vector<16x1xf32>
    %cst_5 = arith.constant 3.200000e+01 : f32
    %7 = vector.broadcast %cst_5 : f32 to vector<16x1xf32>
    %8 = arith.divf %6, %7 : vector<16x1xf32>
    %9 = vector.broadcast %8 : vector<16x1xf32> to vector<16x32xf32>
    %10 = arith.subf %0, %9 : vector<16x32xf32>
    %11 = arith.mulf %10, %10 : vector<16x32xf32>
    %cst_6 = arith.constant dense<0.000000e+00> : vector<16xf32>
    %12 = vector.multi_reduction <add>, %11, %cst_6 [1] : vector<16x32xf32> to vector<16xf32>
    %13 = vector.shape_cast %12 : vector<16xf32> to vector<16x1xf32>
    %cst_7 = arith.constant 3.200000e+01 : f32
    %14 = vector.broadcast %cst_7 : f32 to vector<16x1xf32>
    %15 = arith.divf %13, %14 : vector<16x1xf32>
    %16 = vector.broadcast %8 : vector<16x1xf32> to vector<16x32xf32>
    %17 = arith.subf %0, %16 : vector<16x32xf32>
    %cst_8 = arith.constant 9.99999974E-6 : f32
    %18 = vector.broadcast %cst_8 : f32 to vector<16x1xf32>
    %19 = arith.addf %15, %18 : vector<16x1xf32>
    %20 = math.rsqrt %19 : vector<16x1xf32>
    %21 = vector.broadcast %20 : vector<16x1xf32> to vector<16x32xf32>
    %22 = arith.mulf %17, %21 : vector<16x32xf32>
    %23 = vector.shape_cast %2 : vector<32xf32> to vector<1x32xf32>
    %24 = vector.broadcast %23 : vector<1x32xf32> to vector<16x32xf32>
    %25 = arith.mulf %22, %24 : vector<16x32xf32>
    %26 = vector.shape_cast %4 : vector<32xf32> to vector<1x32xf32>
    %27 = vector.broadcast %26 : vector<1x32xf32> to vector<16x32xf32>
    %28 = arith.addf %25, %27 : vector<16x32xf32>
    %c0_9 = arith.constant 0 : index
    %c0_10 = arith.constant 0 : index
    %29 = vector.load %arg2[%c0_9, %c0_10] : memref<32x96xf32, #tpu.memory_space<vmem>>, vector<32x96xf32>
    %cst_11 = arith.constant dense<0.000000e+00> : vector<16x96xf32>
    %30 = tpu.matmul %28, %29, %cst_11 {dimension_numbers = #tpu.dot_dimension_numbers<[1], [0], [0], [1], [0, 0, 1, 1], [], []>} : vector<16x32xf32>, vector<32x96xf32>, vector<16x96xf32> -> vector<16x96xf32>
    %c0_12 = arith.constant 0 : index
    %c0_13 = arith.constant 0 : index
    %31 = vector.load %arg3[%c0_12, %c0_13] : memref<1x96xf32, #tpu.memory_space<vmem>>, vector<1x96xf32>
    %32 = vector.shape_cast %31 : vector<1x96xf32> to vector<96xf32>
    %33 = vector.shape_cast %32 : vector<96xf32> to vector<1x96xf32>
    %34 = vector.broadcast %33 : vector<1x96xf32> to vector<16x96xf32>
    %35 = arith.addf %30, %34 : vector<16x96xf32>
    %36 = vector.extract_strided_slice %35 {offsets = [0, 0], sizes = [16, 32], strides = [1, 1]} : vector<16x96xf32> to vector<16x32xf32>
    %cst_14 = arith.constant 5.000000e-01 : f32
    %37 = vector.broadcast %cst_14 : f32 to vector<16x32xf32>
    %38 = arith.mulf %36, %37 : vector<16x32xf32>
    %39 = vector.extract_strided_slice %35 {offsets = [0, 32], sizes = [16, 32], strides = [1, 1]} : vector<16x96xf32> to vector<16x32xf32>
    %40 = vector.extract_strided_slice %35 {offsets = [0, 64], sizes = [16, 32], strides = [1, 1]} : vector<16x96xf32> to vector<16x32xf32>
    %41 = vector.shape_cast %38 : vector<16x32xf32> to vector<2x8x8x4xf32>
    %42 = tpu.transpose %41, [0, 2, 1, 3] : vector<2x8x8x4xf32> -> vector<2x8x8x4xf32>
    %43 = vector.shape_cast %42 : vector<2x8x8x4xf32> to vector<16x8x4xf32>
    %44 = vector.shape_cast %39 : vector<16x32xf32> to vector<2x8x8x4xf32>
    %45 = tpu.transpose %44, [0, 2, 1, 3] : vector<2x8x8x4xf32> -> vector<2x8x8x4xf32>
    %46 = vector.shape_cast %45 : vector<2x8x8x4xf32> to vector<16x8x4xf32>
    %47 = vector.shape_cast %40 : vector<16x32xf32> to vector<2x8x8x4xf32>
    %48 = tpu.transpose %47, [0, 2, 1, 3] : vector<2x8x8x4xf32> -> vector<2x8x8x4xf32>
    %49 = vector.shape_cast %48 : vector<2x8x8x4xf32> to vector<16x8x4xf32>
    "tpu.trace_start"() <{level = 10 : i32, message = "gqd,gkd->gqk"}> : () -> ()
    %cst_15 = arith.constant dense<0.000000e+00> : vector<16x8x8xf32>
    %50 = tpu.matmul %43, %46, %cst_15 {dimension_numbers = #tpu.dot_dimension_numbers<[2], [2], [1], [1], [0, 0, 0, 1, 1, 1], [0], [0]>} : vector<16x8x4xf32>, vector<16x8x4xf32>, vector<16x8x8xf32> -> vector<16x8x8xf32>
    "tpu.trace_stop"() : () -> ()
    %cst_16 = arith.constant dense<0xFF800000> : vector<16x8xf32>
    %51 = vector.multi_reduction <maximumf>, %50, %cst_16 [2] : vector<16x8x8xf32> to vector<16x8xf32>
    %52 = vector.shape_cast %51 : vector<16x8xf32> to vector<16x8x1xf32>
    %53 = vector.broadcast %52 : vector<16x8x1xf32> to vector<16x8x8xf32>
    %54 = arith.subf %50, %53 : vector<16x8x8xf32>
    %55 = math.exp %54 : vector<16x8x8xf32>
    %cst_17 = arith.constant dense<0.000000e+00> : vector<16x8xf32>
    %56 = vector.multi_reduction <add>, %55, %cst_17 [2] : vector<16x8x8xf32> to vector<16x8xf32>
    %57 = vector.shape_cast %56 : vector<16x8xf32> to vector<16x8x1xf32>
    %58 = tpu.reciprocal %57 {approx = true} : vector<16x8x1xf32> -> vector<16x8x1xf32>
    %59 = vector.broadcast %58 : vector<16x8x1xf32> to vector<16x8x8xf32>
    %60 = arith.mulf %55, %59 : vector<16x8x8xf32>
    "tpu.trace_start"() <{level = 10 : i32, message = "gqk,gkd->gqd"}> : () -> ()
    %cst_18 = arith.constant dense<0.000000e+00> : vector<16x8x4xf32>
    %61 = tpu.matmul %60, %49, %cst_18 {dimension_numbers = #tpu.dot_dimension_numbers<[2], [1], [1], [2], [0, 0, 0, 1, 1, 2], [0], [0]>} : vector<16x8x8xf32>, vector<16x8x4xf32>, vector<16x8x4xf32> -> vector<16x8x4xf32>
    "tpu.trace_stop"() : () -> ()
    %62 = vector.shape_cast %61 : vector<16x8x4xf32> to vector<2x8x8x4xf32>
    %63 = tpu.transpose %62, [0, 2, 1, 3] : vector<2x8x8x4xf32> -> vector<2x8x8x4xf32>
    %64 = vector.shape_cast %63 : vector<2x8x8x4xf32> to vector<16x32xf32>
    %c0_19 = arith.constant 0 : index
    %c0_20 = arith.constant 0 : index
    %65 = vector.load %arg4[%c0_19, %c0_20] : memref<32x32xf32, #tpu.memory_space<vmem>>, vector<32x32xf32>
    %cst_21 = arith.constant dense<0.000000e+00> : vector<16x32xf32>
    %66 = tpu.matmul %64, %65, %cst_21 {dimension_numbers = #tpu.dot_dimension_numbers<[1], [0], [0], [1], [0, 0, 1, 1], [], []>} : vector<16x32xf32>, vector<32x32xf32>, vector<16x32xf32> -> vector<16x32xf32>
    %c0_22 = arith.constant 0 : index
    %c0_23 = arith.constant 0 : index
    %67 = vector.load %arg5[%c0_22, %c0_23] : memref<1x32xf32, #tpu.memory_space<vmem>>, vector<1x32xf32>
    %68 = vector.shape_cast %67 : vector<1x32xf32> to vector<32xf32>
    %69 = vector.shape_cast %68 : vector<32xf32> to vector<1x32xf32>
    %70 = vector.broadcast %69 : vector<1x32xf32> to vector<16x32xf32>
    %71 = arith.addf %66, %70 : vector<16x32xf32>
    %72 = arith.addf %0, %71 : vector<16x32xf32>
    %c0_24 = arith.constant 0 : index
    %c0_25 = arith.constant 0 : index
    %73 = vector.load %arg12[%c0_24, %c0_25] : memref<1x32xf32, #tpu.memory_space<vmem>>, vector<1x32xf32>
    %74 = vector.shape_cast %73 : vector<1x32xf32> to vector<32xf32>
    %c0_26 = arith.constant 0 : index
    %c0_27 = arith.constant 0 : index
    %75 = vector.load %arg13[%c0_26, %c0_27] : memref<1x32xf32, #tpu.memory_space<vmem>>, vector<1x32xf32>
    %76 = vector.shape_cast %75 : vector<1x32xf32> to vector<32xf32>
    %cst_28 = arith.constant dense<0.000000e+00> : vector<16xf32>
    %77 = vector.multi_reduction <add>, %72, %cst_28 [1] : vector<16x32xf32> to vector<16xf32>
    %78 = vector.shape_cast %77 : vector<16xf32> to vector<16x1xf32>
    %cst_29 = arith.constant 3.200000e+01 : f32
    %79 = vector.broadcast %cst_29 : f32 to vector<16x1xf32>
    %80 = arith.divf %78, %79 : vector<16x1xf32>
    %81 = vector.broadcast %80 : vector<16x1xf32> to vector<16x32xf32>
    %82 = arith.subf %72, %81 : vector<16x32xf32>
    %83 = arith.mulf %82, %82 : vector<16x32xf32>
    %cst_30 = arith.constant dense<0.000000e+00> : vector<16xf32>
    %84 = vector.multi_reduction <add>, %83, %cst_30 [1] : vector<16x32xf32> to vector<16xf32>
    %85 = vector.shape_cast %84 : vector<16xf32> to vector<16x1xf32>
    %cst_31 = arith.constant 3.200000e+01 : f32
    %86 = vector.broadcast %cst_31 : f32 to vector<16x1xf32>
    %87 = arith.divf %85, %86 : vector<16x1xf32>
    %88 = vector.broadcast %80 : vector<16x1xf32> to vector<16x32xf32>
    %89 = arith.subf %72, %88 : vector<16x32xf32>
    %cst_32 = arith.constant 9.99999974E-6 : f32
    %90 = vector.broadcast %cst_32 : f32 to vector<16x1xf32>
    %91 = arith.addf %87, %90 : vector<16x1xf32>
    %92 = math.rsqrt %91 : vector<16x1xf32>
    %93 = vector.broadcast %92 : vector<16x1xf32> to vector<16x32xf32>
    %94 = arith.mulf %89, %93 : vector<16x32xf32>
    %95 = vector.shape_cast %74 : vector<32xf32> to vector<1x32xf32>
    %96 = vector.broadcast %95 : vector<1x32xf32> to vector<16x32xf32>
    %97 = arith.mulf %94, %96 : vector<16x32xf32>
    %98 = vector.shape_cast %76 : vector<32xf32> to vector<1x32xf32>
    %99 = vector.broadcast %98 : vector<1x32xf32> to vector<16x32xf32>
    %100 = arith.addf %97, %99 : vector<16x32xf32>
    %c0_33 = arith.constant 0 : index
    %c0_34 = arith.constant 0 : index
    %101 = vector.load %arg8[%c0_33, %c0_34] : memref<32x128xf32, #tpu.memory_space<vmem>>, vector<32x128xf32>
    %cst_35 = arith.constant dense<0.000000e+00> : vector<16x128xf32>
    %102 = tpu.matmul %100, %101, %cst_35 {dimension_numbers = #tpu.dot_dimension_numbers<[1], [0], [0], [1], [0, 0, 1, 1], [], []>} : vector<16x32xf32>, vector<32x128xf32>, vector<16x128xf32> -> vector<16x128xf32>
    %c0_36 = arith.constant 0 : index
    %c0_37 = arith.constant 0 : index
    %103 = vector.load %arg9[%c0_36, %c0_37] : memref<1x128xf32, #tpu.memory_space<vmem>>, vector<1x128xf32>
    %104 = vector.shape_cast %103 : vector<1x128xf32> to vector<128xf32>
    %105 = vector.shape_cast %104 : vector<128xf32> to vector<1x128xf32>
    %106 = vector.broadcast %105 : vector<1x128xf32> to vector<16x128xf32>
    %107 = arith.addf %102, %106 : vector<16x128xf32>
    %cst_38 = arith.constant 0.000000e+00 : f32
    %108 = vector.broadcast %cst_38 : f32 to vector<16x128xf32>
    %109 = arith.maximumf %107, %108 : vector<16x128xf32>
    %c0_39 = arith.constant 0 : index
    %c0_40 = arith.constant 0 : index
    %110 = vector.load %arg10[%c0_39, %c0_40] : memref<128x32xf32, #tpu.memory_space<vmem>>, vector<128x32xf32>
    %cst_41 = arith.constant dense<0.000000e+00> : vector<16x32xf32>
    %111 = tpu.matmul %109, %110, %cst_41 {dimension_numbers = #tpu.dot_dimension_numbers<[1], [0], [0], [1], [0, 0, 1, 1], [], []>} : vector<16x128xf32>, vector<128x32xf32>, vector<16x32xf32> -> vector<16x32xf32>
    %c0_42 = arith.constant 0 : index
    %c0_43 = arith.constant 0 : index
    %112 = vector.load %arg11[%c0_42, %c0_43] : memref<1x32xf32, #tpu.memory_space<vmem>>, vector<1x32xf32>
    %113 = vector.shape_cast %112 : vector<1x32xf32> to vector<32xf32>
    %114 = vector.shape_cast %113 : vector<32xf32> to vector<1x32xf32>
    %115 = vector.broadcast %114 : vector<1x32xf32> to vector<16x32xf32>
    %116 = arith.addf %111, %115 : vector<16x32xf32>
    %117 = arith.addf %72, %116 : vector<16x32xf32>
    %c0_44 = arith.constant 0 : index
    %c0_45 = arith.constant 0 : index
    %118 = vector.load %arg14[%c0_44, %c0_45] : memref<16x32xf32, #tpu.memory_space<vmem>>, vector<16x32xf32>
    tpu.vector_store %arg14[%c0_44, %c0_45], %117 {strides = array<i32>} : memref<16x32xf32, #tpu.memory_space<vmem>>, vector<16x32xf32>,
    return
  }
  func.func @transform_0(%arg0: i32) -> (i32, i32) {
    %c0_i32 = arith.constant 0 : i32
    %c0_i32_0 = arith.constant 0 : i32
    return %arg0, %c0_i32 : i32, i32
  }
  func.func @transform_1(%arg0: i32) -> (i32, i32) {
    %c0_i32 = arith.constant 0 : i32
    %c0_i32_0 = arith.constant 0 : i32
    %c0_i32_1 = arith.constant 0 : i32
    return %c0_i32, %c0_i32_0 : i32, i32
  }
  func.func @transform_2(%arg0: i32) -> (i32, i32) {
    %c0_i32 = arith.constant 0 : i32
    %c0_i32_0 = arith.constant 0 : i32
    %c0_i32_1 = arith.constant 0 : i32
    return %c0_i32, %c0_i32_0 : i32, i32
  }
  func.func @transform_3(%arg0: i32) -> (i32, i32) {
    %c0_i32 = arith.constant 0 : i32
    %c0_i32_0 = arith.constant 0 : i32
    %c0_i32_1 = arith.constant 0 : i32
    return %c0_i32, %c0_i32_0 : i32, i32
  }
  func.func @transform_4(%arg0: i32) -> (i32, i32) {
    %c0_i32 = arith.constant 0 : i32
    %c0_i32_0 = arith.constant 0 : i32
    %c0_i32_1 = arith.constant 0 : i32
    return %c0_i32, %c0_i32_0 : i32, i32
  }
  func.func @transform_5(%arg0: i32) -> (i32, i32) {
    %c0_i32 = arith.constant 0 : i32
    %c0_i32_0 = arith.constant 0 : i32
    %c0_i32_1 = arith.constant 0 : i32
    return %c0_i32, %c0_i32_0 : i32, i32
  }
  func.func @transform_6(%arg0: i32) -> (i32, i32) {
    %c0_i32 = arith.constant 0 : i32
    %c0_i32_0 = arith.constant 0 : i32
    %c0_i32_1 = arith.constant 0 : i32
    return %c0_i32, %c0_i32_0 : i32, i32
  }
  func.func @transform_7(%arg0: i32) -> (i32, i32) {
    %c0_i32 = arith.constant 0 : i32
    %c0_i32_0 = arith.constant 0 : i32
    %c0_i32_1 = arith.constant 0 : i32
    return %c0_i32, %c0_i32_0 : i32, i32
  }
  func.func @transform_8(%arg0: i32) -> (i32, i32) {
    %c0_i32 = arith.constant 0 : i32
    %c0_i32_0 = arith.constant 0 : i32
    %c0_i32_1 = arith.constant 0 : i32
    return %c0_i32, %c0_i32_0 : i32, i32
  }
  func.func @transform_9(%arg0: i32) -> (i32, i32) {
    %c0_i32 = arith.constant 0 : i32
    %c0_i32_0 = arith.constant 0 : i32
    %c0_i32_1 = arith.constant 0 : i32
    return %c0_i32, %c0_i32_0 : i32, i32
  }
  func.func @transform_10(%arg0: i32) -> (i32, i32) {
    %c0_i32 = arith.constant 0 : i32
    %c0_i32_0 = arith.constant 0 : i32
    %c0_i32_1 = arith.constant 0 : i32
    return %c0_i32, %c0_i32_0 : i32, i32
  }
  func.func @transform_11(%arg0: i32) -> (i32, i32) {
    %c0_i32 = arith.constant 0 : i32
    %c0_i32_0 = arith.constant 0 : i32
    %c0_i32_1 = arith.constant 0 : i32
    return %c0_i32, %c0_i32_0 : i32, i32
  }
  func.func @transform_12(%arg0: i32) -> (i32, i32) {
    %c0_i32 = arith.constant 0 : i32
    %c0_i32_0 = arith.constant 0 : i32
    %c0_i32_1 = arith.constant 0 : i32
    return %c0_i32, %c0_i32_0 : i32, i32
  }
  func.func @transform_13(%arg0: i32) -> (i32, i32) {
    %c0_i32 = arith.constant 0 : i32
    %c0_i32_0 = arith.constant 0 : i32
    return %arg0, %c0_i32 : i32, i32
  }
}

</mosaic_0001>

<llo_original>
// kernel: tpu_custom_call.1
$region0: #{tpu_custom_call.1}
  #allocation0 [shape = 'u32[]', space=smem, size = 0x4, offset = 0x4, fixed_abs, tag = 'smem constant byte address 0x4 - core index']
  #allocation1 [shape = 'u32[72,128]{1,0:T(1,128)}', space=vmem, size = 0x9000, scoped, tag = 'internal scratch']
  %s0 = inlined_call_operand.vmem [shape: f32[16,32], index: 0, kind: input, shape index: {}]
  %s1 = inlined_call_operand.vmem [shape: f32[32,96], index: 1, kind: input, shape index: {}]
  %s2 = inlined_call_operand.vmem [shape: f32[1,96], index: 2, kind: input, shape index: {}]
  %s3 = inlined_call_operand.vmem [shape: f32[32,32], index: 3, kind: input, shape index: {}]
  %s4 = inlined_call_operand.vmem [shape: f32[1,32], index: 4, kind: input, shape index: {}]
  %s5 = inlined_call_operand.vmem [shape: f32[1,32], index: 5, kind: input, shape index: {}]
  %s6 = inlined_call_operand.vmem [shape: f32[1,32], index: 6, kind: input, shape index: {}]
  %s7 = inlined_call_operand.vmem [shape: f32[32,128], index: 7, kind: input, shape index: {}]
  %s8 = inlined_call_operand.vmem [shape: f32[1,128], index: 8, kind: input, shape index: {}]
  %s9 = inlined_call_operand.vmem [shape: f32[128,32], index: 9, kind: input, shape index: {}]
  %s10 = inlined_call_operand.vmem [shape: f32[1,32], index: 10, kind: input, shape index: {}]
  %s11 = inlined_call_operand.vmem [shape: f32[1,32], index: 11, kind: input, shape index: {}]
  %s12 = inlined_call_operand.vmem [shape: f32[1,32], index: 12, kind: input, shape index: {}]
  %s13 = inlined_call_operand.hbm [shape: f32[16,32], index: 13, kind: output, shape index: {}]
  %s14 = sld [smem:[#allocation0]]
  $region62: #{tpu_custom_call.1} parent=0
    _
  %s16 = ssub.s32 1, %s14
  %s17 = scalar_select 0, %s16, %s14
  $region1: #{tpu_custom_call.1} parent=0
    #allocation2 [shape = 'u8[8192]{0}', space=vmem, size = 0x2000, scoped, tag = 'output window, operand 0, single buffered']
    #allocation3 [shape = 's32[1]{0}', space=sflag, size = 0x4, scoped, tag = 'scoped memory for tpu_custom_call.1']
    %18 = vsyncpa [#allocation3], 0
    // Predicated region
    $region2: #{tpu_custom_call.1} parent=1 // pred_check
      _
    $region3: #{tpu_custom_call.1} parent=1 // pred_check_branch
      %20 = sbr.rel (0) target = $region5
    $region4: #{tpu_custom_call.1} parent=1 // pred_region
      _
    $region5: #{tpu_custom_call.1} parent=1 // pred_fallthru
      _
    // Predicated region
    $region6: #{tpu_custom_call.1} parent=1 // pred_check
      _
    $region7: #{tpu_custom_call.1} parent=1 // pred_check_branch
      %22 = sbr.rel (0) target = $region9
    $region8: #{tpu_custom_call.1} parent=1 // pred_region
      _
    $region9: #{tpu_custom_call.1} parent=1 // pred_fallthru
      _
    // Predicated region
    $region10: #{tpu_custom_call.1} parent=1 // pred_check
      _
    $region11: #{tpu_custom_call.1} parent=1 // pred_check_branch
      %24 = sbr.rel (0) target = $region13
    $region12: #{tpu_custom_call.1} parent=1 // pred_region
      _
    $region13: #{tpu_custom_call.1} parent=1 // pred_fallthru
      _
    // Predicated region
    $region14: #{tpu_custom_call.1} parent=1 // pred_check
      _
    $region15: #{tpu_custom_call.1} parent=1 // pred_check_branch
      %26 = sbr.rel (0) target = $region17
    $region16: #{tpu_custom_call.1} parent=1 // pred_region
      _
    $region17: #{tpu_custom_call.1} parent=1 // pred_fallthru
      _
    // Predicated region
    $region18: #{tpu_custom_call.1} parent=1 // pred_check
      _
    $region19: #{tpu_custom_call.1} parent=1 // pred_check_branch
      %28 = sbr.rel (0) target = $region21
    $region20: #{tpu_custom_call.1} parent=1 // pred_region
      _
    $region21: #{tpu_custom_call.1} parent=1 // pred_fallthru
      _
    // Predicated region
    $region22: #{tpu_custom_call.1} parent=1 // pred_check
      _
    $region23: #{tpu_custom_call.1} parent=1 // pred_check_branch
      %30 = sbr.rel (0) target = $region25
    $region24: #{tpu_custom_call.1} parent=1 // pred_region
      _
    $region25: #{tpu_custom_call.1} parent=1 // pred_fallthru
      _
    // Predicated region
    $region26: #{tpu_custom_call.1} parent=1 // pred_check
      _
    $region27: #{tpu_custom_call.1} parent=1 // pred_check_branch
      %32 = sbr.rel (0) target = $region29
    $region28: #{tpu_custom_call.1} parent=1 // pred_region
      _
    $region29: #{tpu_custom_call.1} parent=1 // pred_fallthru
      _
    // Predicated region
    $region30: #{tpu_custom_call.1} parent=1 // pred_check
      _
    $region31: #{tpu_custom_call.1} parent=1 // pred_check_branch
      %34 = sbr.rel (0) target = $region33
    $region32: #{tpu_custom_call.1} parent=1 // pred_region
      _
    $region33: #{tpu_custom_call.1} parent=1 // pred_fallthru
      _
    // Predicated region
    $region34: #{tpu_custom_call.1} parent=1 // pred_check
      _
    $region35: #{tpu_custom_call.1} parent=1 // pred_check_branch
      %36 = sbr.rel (0) target = $region37
    $region36: #{tpu_custom_call.1} parent=1 // pred_region
      _
    $region37: #{tpu_custom_call.1} parent=1 // pred_fallthru
      _
    // Predicated region
    $region38: #{tpu_custom_call.1} parent=1 // pred_check
      _
    $region39: #{tpu_custom_call.1} parent=1 // pred_check_branch
      %38 = sbr.rel (0) target = $region41
    $region40: #{tpu_custom_call.1} parent=1 // pred_region
      _
    $region41: #{tpu_custom_call.1} parent=1 // pred_fallthru
      _
    // Predicated region
    $region42: #{tpu_custom_call.1} parent=1 // pred_check
      _
    $region43: #{tpu_custom_call.1} parent=1 // pred_check_branch
      %40 = sbr.rel (0) target = $region45
    $region44: #{tpu_custom_call.1} parent=1 // pred_region
      _
    $region45: #{tpu_custom_call.1} parent=1 // pred_fallthru
      _
    // Predicated region
    $region46: #{tpu_custom_call.1} parent=1 // pred_check
      _
    $region47: #{tpu_custom_call.1} parent=1 // pred_check_branch
      %42 = sbr.rel (0) target = $region49
    $region48: #{tpu_custom_call.1} parent=1 // pred_region
      _
    $region49: #{tpu_custom_call.1} parent=1 // pred_fallthru
      _
    // Predicated region
    $region50: #{tpu_custom_call.1} parent=1 // pred_check
      _
    $region51: #{tpu_custom_call.1} parent=1 // pred_check_branch
      %44 = sbr.rel (0) target = $region53
    $region52: #{tpu_custom_call.1} parent=1 // pred_region
      _
    $region53: #{tpu_custom_call.1} parent=1 // pred_fallthru
      _
    %v45 = vld [vmem:[%s0] sm:$0xff]
    %v46 = vld [vmem:[%s0 + $0x8] sm:$0xff]
    %v47 = vld [vmem:[%s5] sm:$0x1]
    %v48 = vld [vmem:[%s6] sm:$0x1]
    %vm49 = vcmask 261120
    %v50 = vsel %vm49, %v45, 0.0
    %51 = vadd.xlane.f32.xlu0 %v50
    %v52 = vpop.xlane.xlu0 %51
    %v53 = vsel %vm49, %v46, 0.0
    %54 = vadd.xlane.f32.xlu0 %v53
    %v55 = vpop.xlane.xlu0 %54
    %v56 = vrcp.pop 32.0
    %v57 = vmul.f32 32.0, %v56
    %v58 = vsub.f32 1.0, %v57
    %v59 = vmul.f32 %v56, %v58
    %v60 = vadd.f32 %v56, %v59
    %vm61 = vweird.f32 %v56
    %v62 = vsel %vm61, %v56, %v60
    %v63 = vmul.f32 %v52, %v62
    %v64 = vmul.f32 %v55, %v62
    %v65 = vsub.f32 %v45, %v63
    %v66 = vsub.f32 %v46, %v64
    %v67 = vmul.f32 %v65, %v65
    %v68 = vmul.f32 %v66, %v66
    %v69 = vsel %vm49, %v67, 0.0
    %70 = vadd.xlane.f32.xlu0 %v69
    %v71 = vpop.xlane.xlu0 %70
    %v72 = vsel %vm49, %v68, 0.0
    %73 = vadd.xlane.f32.xlu0 %v72
    %v74 = vpop.xlane.xlu0 %73
    %v75 = vmul.f32 %v71, %v62
    %v76 = vmul.f32 %v74, %v62
    %v77 = vadd.f32 %v75, 1e-05
    %v78 = vadd.f32 %v76, 1e-05
    %v79 = vrsqrt.pop %v77
    %v80 = vmul.f32 %v79, %v77
    %v81 = vmul.f32 %v80, %v79
    %v82 = vmul.f32 0.5, %v81
    %v83 = vsub.f32 1.5, %v82
    %v84 = vmul.f32 %v79, %v83
    %vm85 = vweird.f32 %v77
    %vm86 = vweird.f32 %v79
    %vm87 = vmor %vm85, %vm86
    %v88 = vsel %vm87, %v79, %v84
    %v89 = vrsqrt.pop %v78
    %v90 = vmul.f32 %v89, %v78
    %v91 = vmul.f32 %v90, %v89
    %v92 = vmul.f32 0.5, %v91
    %v93 = vsub.f32 1.5, %v92
    %v94 = vmul.f32 %v89, %v93
    %vm95 = vweird.f32 %v78
    %vm96 = vweird.f32 %v89
    %vm97 = vmor %vm95, %vm96
    %v98 = vsel %vm97, %v89, %v94
    %v99 = vmul.f32 %v65, %v88
    %v100 = vmul.f32 %v66, %v98
    %v102 = vperm.slane %v47, 0
    %v104 = vmul.f32 %v99, %v102
    %v105 = vmul.f32 %v100, %v102
    %v107 = vperm.slane %v48, 0
    %v109 = vadd.f32 %v104, %v107
    %v110 = vadd.f32 %v105, %v107
    %v111 = vld [vmem:[%s1] sm:$0xff]
    %v112 = vld [vmem:[%s1 + $0x8] sm:$0xff]
    %v113 = vld [vmem:[%s1 + $0x10] sm:$0xff]
    %v114 = vld [vmem:[%s1 + $0x18] sm:$0xff]
    %v115 = vld [vmem:[%s2] sm:$0x1]
    %v117 = vperm.slane %v115, 0
    %v120 = vsel %vm49, %v109, 0
    %v123 = vsel %vm49, %v110, 0
    %125 = vmatpush.msra.mxu0 0.0
    %126 = vmatpush.msra.mxu0 0.0
    %127 = vmatpush.msra.mxu0 0.0
    %128 = vmatpush.msra.mxu0 0.0
    %129 = vmatpush.msra.mxu0 0.0
    %130 = vmatpush.msra.mxu0 0.0
    %131 = vmatpush.msra.mxu0 0.0
    %132 = vmatpush.msra.mxu0 0.0
    %133 = vmatpush.msra.mxu0 0.0
    %134 = vmatpush.msra.mxu0 0.0
    %135 = vmatpush.msra.mxu0 0.0
    %136 = vmatpush.msra.mxu0 0.0
    %137 = vmatpush.msra.mxu0 %v114
    %138 = vmatpush.msra.mxu0 %v113
    %139 = vmatpush.msra.mxu0 %v112
    %140 = vmatpush.msra.mxu0 %v111
    %141 = vmatmul.f32.gmra.mxu0 %v120
    %v142 = vpop.f32.mrf.mxu0
    %v143 = vadd.f32 %v117, %v142
    %144 = vmatmul.f32.gmra.mxu0 %v123
    %v145 = vpop.f32.mrf.mxu0
    %v146 = vadd.f32 %v117, %v145
    %147 = vdwg.mxu0
    %v148 = vmul.f32 %v143, 0.5
    %v149 = vmul.f32 %v146, 0.5
    %152 = vrot.lane.b32.xlu0 %v148, 124
    %v153 = vpop.permute.xlu0 %152
    %154 = vrot.lane.b32.xlu0 %v149, 124
    %v155 = vpop.permute.xlu0 %154
    %158 = vrot.lane.b32.xlu0 %v148, 120
    %v159 = vpop.permute.xlu0 %158
    %160 = vrot.lane.b32.xlu0 %v149, 120
    %v161 = vpop.permute.xlu0 %160
    %164 = vrot.lane.b32.xlu0 %v148, 116
    %v165 = vpop.permute.xlu0 %164
    %166 = vrot.lane.b32.xlu0 %v149, 116
    %v167 = vpop.permute.xlu0 %166
    %170 = vrot.lane.b32.xlu0 %v148, 112
    %v171 = vpop.permute.xlu0 %170
    %172 = vrot.lane.b32.xlu0 %v149, 112
    %v173 = vpop.permute.xlu0 %172
    %176 = vrot.lane.b32.xlu0 %v148, 108
    %v177 = vpop.permute.xlu0 %176
    %178 = vrot.lane.b32.xlu0 %v149, 108
    %v179 = vpop.permute.xlu0 %178
    %182 = vrot.lane.b32.xlu0 %v148, 104
    %v183 = vpop.permute.xlu0 %182
    %184 = vrot.lane.b32.xlu0 %v149, 104
    %v185 = vpop.permute.xlu0 %184
    %188 = vrot.lane.b32.xlu0 %v148, 100
    %v189 = vpop.permute.xlu0 %188
    %190 = vrot.lane.b32.xlu0 %v149, 100
    %v191 = vpop.permute.xlu0 %190
    %v194 = vrot.slane %v159, 4
    %vm195 = vcmask 1047556
    %v196 = vsel %vm195, %v194, %v148
    %v197 = vrot.slane %v148, 4
    %v198 = vsel %vm195, %v159, %v197
    %v200 = vunpack.c.l.s4 1983009808
    %v201 = vunpack.c.0.s8 %v200
    %v202 = vperm.slane %v196, %v201
    %v204 = vunpack.c.l.s4 1983009808
    %v205 = vunpack.c.0.s8 %v204
    %v206 = vperm.slane %v198, %v205
    %v207 = vrot.slane %v165, 4
    %v208 = vsel %vm195, %v207, %v153
    %v209 = vrot.slane %v153, 4
    %v210 = vsel %vm195, %v165, %v209
    %v212 = vunpack.c.l.s4 1983009808
    %v213 = vunpack.c.0.s8 %v212
    %v214 = vperm.slane %v208, %v213
    %v216 = vunpack.c.l.s4 1983009808
    %v217 = vunpack.c.0.s8 %v216
    %v218 = vperm.slane %v210, %v217
    %v219 = vrot.slane %v183, 4
    %v220 = vsel %vm195, %v219, %v171
    %v221 = vrot.slane %v171, 4
    %v222 = vsel %vm195, %v183, %v221
    %v224 = vunpack.c.l.s4 1983009808
    %v225 = vunpack.c.0.s8 %v224
    %v226 = vperm.slane %v220, %v225
    %v228 = vunpack.c.l.s4 1983009808
    %v229 = vunpack.c.0.s8 %v228
    %v230 = vperm.slane %v222, %v229
    %v231 = vrot.slane %v189, 4
    %v232 = vsel %vm195, %v231, %v177
    %v233 = vrot.slane %v177, 4
    %v234 = vsel %vm195, %v189, %v233
    %v236 = vunpack.c.l.s4 1983009808
    %v237 = vunpack.c.0.s8 %v236
    %v238 = vperm.slane %v232, %v237
    %v240 = vunpack.c.l.s4 1983009808
    %v241 = vunpack.c.0.s8 %v240
    %v242 = vperm.slane %v234, %v241
    %v243 = vrot.slane %v214, 4
    %v244 = vsel %vm195, %v243, %v202
    %v245 = vrot.slane %v202, 4
    %v246 = vsel %vm195, %v214, %v245
    %v248 = vunpack.c.l.s4 1934713408
    %v249 = vunpack.c.0.s8 %v248
    %v250 = vperm.slane %v244, %v249
    %v252 = vunpack.c.l.s4 1934713408
    %v253 = vunpack.c.0.s8 %v252
    %v254 = vperm.slane %v246, %v253
    %v255 = vrot.slane %v218, 4
    %v256 = vsel %vm195, %v255, %v206
    %v257 = vrot.slane %v206, 4
    %v258 = vsel %vm195, %v218, %v257
    %v260 = vunpack.c.l.s4 1934713408
    %v261 = vunpack.c.0.s8 %v260
    %v262 = vperm.slane %v256, %v261
    %v264 = vunpack.c.l.s4 1934713408
    %v265 = vunpack.c.0.s8 %v264
    %v266 = vperm.slane %v258, %v265
    %v267 = vrot.slane %v238, 4
    %v268 = vsel %vm195, %v267, %v226
    %v269 = vrot.slane %v226, 4
    %v270 = vsel %vm195, %v238, %v269
    %v272 = vunpack.c.l.s4 1934713408
    %v273 = vunpack.c.0.s8 %v272
    %v274 = vperm.slane %v268, %v273
    %v276 = vunpack.c.l.s4 1934713408
    %v277 = vunpack.c.0.s8 %v276
    %v278 = vperm.slane %v270, %v277
    %v279 = vrot.slane %v242, 4
    %v280 = vsel %vm195, %v279, %v230
    %v281 = vrot.slane %v230, 4
    %v282 = vsel %vm195, %v242, %v281
    %v284 = vunpack.c.l.s4 1934713408
    %v285 = vunpack.c.0.s8 %v284
    %v286 = vperm.slane %v280, %v285
    %v288 = vunpack.c.l.s4 1934713408
    %v289 = vunpack.c.0.s8 %v288
    %v290 = vperm.slane %v282, %v289
    %v291 = vrot.slane %v274, 4
    %v292 = vsel %vm195, %v291, %v250
    %v293 = vrot.slane %v250, 4
    %v294 = vsel %vm195, %v274, %v293
    %v295 = vrot.slane %v278, 4
    %v296 = vsel %vm195, %v295, %v254
    %v297 = vrot.slane %v254, 4
    %v298 = vsel %vm195, %v278, %v297
    %v299 = vrot.slane %v286, 4
    %v300 = vsel %vm195, %v299, %v262
    %v301 = vrot.slane %v262, 4
    %v302 = vsel %vm195, %v286, %v301
    %v303 = vrot.slane %v290, 4
    %v304 = vsel %vm195, %v303, %v266
    %v305 = vrot.slane %v266, 4
    %v306 = vsel %vm195, %v290, %v305
    %v307 = vrot.slane %v161, 4
    %v308 = vsel %vm195, %v307, %v149
    %v309 = vrot.slane %v149, 4
    %v310 = vsel %vm195, %v161, %v309
    %v312 = vunpack.c.l.s4 1983009808
    %v313 = vunpack.c.0.s8 %v312
    %v314 = vperm.slane %v308, %v313
    %v316 = vunpack.c.l.s4 1983009808
    %v317 = vunpack.c.0.s8 %v316
    %v318 = vperm.slane %v310, %v317
    %v319 = vrot.slane %v167, 4
    %v320 = vsel %vm195, %v319, %v155
    %v321 = vrot.slane %v155, 4
    %v322 = vsel %vm195, %v167, %v321
    %v324 = vunpack.c.l.s4 1983009808
    %v325 = vunpack.c.0.s8 %v324
    %v326 = vperm.slane %v320, %v325
    %v328 = vunpack.c.l.s4 1983009808
    %v329 = vunpack.c.0.s8 %v328
    %v330 = vperm.slane %v322, %v329
    %v331 = vrot.slane %v185, 4
    %v332 = vsel %vm195, %v331, %v173
    %v333 = vrot.slane %v173, 4
    %v334 = vsel %vm195, %v185, %v333
    %v336 = vunpack.c.l.s4 1983009808
    %v337 = vunpack.c.0.s8 %v336
    %v338 = vperm.slane %v332, %v337
    %v340 = vunpack.c.l.s4 1983009808
    %v341 = vunpack.c.0.s8 %v340
    %v342 = vperm.slane %v334, %v341
    %v343 = vrot.slane %v191, 4
    %v344 = vsel %vm195, %v343, %v179
    %v345 = vrot.slane %v179, 4
    %v346 = vsel %vm195, %v191, %v345
    %v348 = vunpack.c.l.s4 1983009808
    %v349 = vunpack.c.0.s8 %v348
    %v350 = vperm.slane %v344, %v349
    %v352 = vunpack.c.l.s4 1983009808
    %v353 = vunpack.c.0.s8 %v352
    %v354 = vperm.slane %v346, %v353
    %v355 = vrot.slane %v326, 4
    %v356 = vsel %vm195, %v355, %v314
    %v357 = vrot.slane %v314, 4
    %v358 = vsel %vm195, %v326, %v357
    %v360 = vunpack.c.l.s4 1934713408
    %v361 = vunpack.c.0.s8 %v360
    %v362 = vperm.slane %v356, %v361
    %v364 = vunpack.c.l.s4 1934713408
    %v365 = vunpack.c.0.s8 %v364
    %v366 = vperm.slane %v358, %v365
    %v367 = vrot.slane %v330, 4
    %v368 = vsel %vm195, %v367, %v318
    %v369 = vrot.slane %v318, 4
    %v370 = vsel %vm195, %v330, %v369
    %v372 = vunpack.c.l.s4 1934713408
    %v373 = vunpack.c.0.s8 %v372
    %v374 = vperm.slane %v368, %v373
    %v376 = vunpack.c.l.s4 1934713408
    %v377 = vunpack.c.0.s8 %v376
    %v378 = vperm.slane %v370, %v377
    %v379 = vrot.slane %v350, 4
    %v380 = vsel %vm195, %v379, %v338
    %v381 = vrot.slane %v338, 4
    %v382 = vsel %vm195, %v350, %v381
    %v384 = vunpack.c.l.s4 1934713408
    %v385 = vunpack.c.0.s8 %v384
    %v386 = vperm.slane %v380, %v385
    %v388 = vunpack.c.l.s4 1934713408
    %v389 = vunpack.c.0.s8 %v388
    %v390 = vperm.slane %v382, %v389
    %v391 = vrot.slane %v354, 4
    %v392 = vsel %vm195, %v391, %v342
    %v393 = vrot.slane %v342, 4
    %v394 = vsel %vm195, %v354, %v393
    %v396 = vunpack.c.l.s4 1934713408
    %v397 = vunpack.c.0.s8 %v396
    %v398 = vperm.slane %v392, %v397
    %v400 = vunpack.c.l.s4 1934713408
    %v401 = vunpack.c.0.s8 %v400
    %v402 = vperm.slane %v394, %v401
    %v403 = vrot.slane %v386, 4
    %v404 = vsel %vm195, %v403, %v362
    %v405 = vrot.slane %v362, 4
    %v406 = vsel %vm195, %v386, %v405
    %v407 = vrot.slane %v390, 4
    %v408 = vsel %vm195, %v407, %v366
    %v409 = vrot.slane %v366, 4
    %v410 = vsel %vm195, %v390, %v409
    %v411 = vrot.slane %v398, 4
    %v412 = vsel %vm195, %v411, %v374
    %v413 = vrot.slane %v374, 4
    %v414 = vsel %vm195, %v398, %v413
    %v415 = vrot.slane %v402, 4
    %v416 = vsel %vm195, %v415, %v378
    %v417 = vrot.slane %v378, 4
    %v418 = vsel %vm195, %v402, %v417
    %v419 = vrot.slane %v296, 4
    %v420 = vsel %vm195, %v419, %v292
    %v421 = vrot.slane %v292, 4
    %v422 = vsel %vm195, %v296, %v421
    %v424 = vunpack.c.l.s4 1983009808
    %v425 = vunpack.c.0.s8 %v424
    %v426 = vperm.slane %v420, %v425
    %v428 = vunpack.c.l.s4 1983009808
    %v429 = vunpack.c.0.s8 %v428
    %v430 = vperm.slane %v422, %v429
    %v431 = vrot.slane %v298, 4
    %v432 = vsel %vm195, %v431, %v294
    %v433 = vrot.slane %v294, 4
    %v434 = vsel %vm195, %v298, %v433
    %v436 = vunpack.c.l.s4 1983009808
    %v437 = vunpack.c.0.s8 %v436
    %v438 = vperm.slane %v432, %v437
    %v440 = vunpack.c.l.s4 1983009808
    %v441 = vunpack.c.0.s8 %v440
    %v442 = vperm.slane %v434, %v441
    %v443 = vrot.slane %v304, 4
    %v444 = vsel %vm195, %v443, %v300
    %v445 = vrot.slane %v300, 4
    %v446 = vsel %vm195, %v304, %v445
    %v448 = vunpack.c.l.s4 1983009808
    %v449 = vunpack.c.0.s8 %v448
    %v450 = vperm.slane %v444, %v449
    %v452 = vunpack.c.l.s4 1983009808
    %v453 = vunpack.c.0.s8 %v452
    %v454 = vperm.slane %v446, %v453
    %v455 = vrot.slane %v306, 4
    %v456 = vsel %vm195, %v455, %v302
    %v457 = vrot.slane %v302, 4
    %v458 = vsel %vm195, %v306, %v457
    %v460 = vunpack.c.l.s4 1983009808
    %v461 = vunpack.c.0.s8 %v460
    %v462 = vperm.slane %v456, %v461
    %v464 = vunpack.c.l.s4 1983009808
    %v465 = vunpack.c.0.s8 %v464
    %v466 = vperm.slane %v458, %v465
    %v467 = vrot.slane %v438, 4
    %v468 = vsel %vm195, %v467, %v426
    %v469 = vrot.slane %v426, 4
    %v470 = vsel %vm195, %v438, %v469
    %v472 = vunpack.c.l.s4 1934713408
    %v473 = vunpack.c.0.s8 %v472
    %v474 = vperm.slane %v468, %v473
    %v476 = vunpack.c.l.s4 1934713408
    %v477 = vunpack.c.0.s8 %v476
    %v478 = vperm.slane %v470, %v477
    %v479 = vrot.slane %v442, 4
    %v480 = vsel %vm195, %v479, %v430
    %v481 = vrot.slane %v430, 4
    %v482 = vsel %vm195, %v442, %v481
    %v484 = vunpack.c.l.s4 1934713408
    %v485 = vunpack.c.0.s8 %v484
    %v486 = vperm.slane %v480, %v485
    %v488 = vunpack.c.l.s4 1934713408
    %v489 = vunpack.c.0.s8 %v488
    %v490 = vperm.slane %v482, %v489
    %v491 = vrot.slane %v462, 4
    %v492 = vsel %vm195, %v491, %v450
    %v493 = vrot.slane %v450, 4
    %v494 = vsel %vm195, %v462, %v493
    %v496 = vunpack.c.l.s4 1934713408
    %v497 = vunpack.c.0.s8 %v496
    %v498 = vperm.slane %v492, %v497
    %v500 = vunpack.c.l.s4 1934713408
    %v501 = vunpack.c.0.s8 %v500
    %v502 = vperm.slane %v494, %v501
    %v503 = vrot.slane %v466, 4
    %v504 = vsel %vm195, %v503, %v454
    %v505 = vrot.slane %v454, 4
    %v506 = vsel %vm195, %v466, %v505
    %v508 = vunpack.c.l.s4 1934713408
    %v509 = vunpack.c.0.s8 %v508
    %v510 = vperm.slane %v504, %v509
    %v512 = vunpack.c.l.s4 1934713408
    %v513 = vunpack.c.0.s8 %v512
    %v514 = vperm.slane %v506, %v513
    %v515 = vrot.slane %v498, 4
    %v516 = vsel %vm195, %v515, %v474
    %v517 = vrot.slane %v474, 4
    %v518 = vsel %vm195, %v498, %v517
    %v519 = vrot.slane %v502, 4
    %v520 = vsel %vm195, %v519, %v478
    %v521 = vrot.slane %v478, 4
    %v522 = vsel %vm195, %v502, %v521
    %v523 = vrot.slane %v510, 4
    %v524 = vsel %vm195, %v523, %v486
    %v525 = vrot.slane %v486, 4
    %v526 = vsel %vm195, %v510, %v525
    %v527 = vrot.slane %v514, 4
    %v528 = vsel %vm195, %v527, %v490
    %v529 = vrot.slane %v490, 4
    %v530 = vsel %vm195, %v514, %v529
    %v531 = vrot.slane %v408, 4
    %v532 = vsel %vm195, %v531, %v404
    %v533 = vrot.slane %v404, 4
    %v534 = vsel %vm195, %v408, %v533
    %v536 = vunpack.c.l.s4 1983009808
    %v537 = vunpack.c.0.s8 %v536
    %v538 = vperm.slane %v532, %v537
    %v540 = vunpack.c.l.s4 1983009808
    %v541 = vunpack.c.0.s8 %v540
    %v542 = vperm.slane %v534, %v541
    %v543 = vrot.slane %v410, 4
    %v544 = vsel %vm195, %v543, %v406
    %v545 = vrot.slane %v406, 4
    %v546 = vsel %vm195, %v410, %v545
    %v548 = vunpack.c.l.s4 1983009808
    %v549 = vunpack.c.0.s8 %v548
    %v550 = vperm.slane %v544, %v549
    %v552 = vunpack.c.l.s4 1983009808
    %v553 = vunpack.c.0.s8 %v552
    %v554 = vperm.slane %v546, %v553
    %v555 = vrot.slane %v416, 4
    %v556 = vsel %vm195, %v555, %v412
    %v557 = vrot.slane %v412, 4
    %v558 = vsel %vm195, %v416, %v557
    %v560 = vunpack.c.l.s4 1983009808
    %v561 = vunpack.c.0.s8 %v560
    %v562 = vperm.slane %v556, %v561
    %v564 = vunpack.c.l.s4 1983009808
    %v565 = vunpack.c.0.s8 %v564
    %v566 = vperm.slane %v558, %v565
    %v567 = vrot.slane %v418, 4
    %v568 = vsel %vm195, %v567, %v414
    %v569 = vrot.slane %v414, 4
    %v570 = vsel %vm195, %v418, %v569
    %v572 = vunpack.c.l.s4 1983009808
    %v573 = vunpack.c.0.s8 %v572
    %v574 = vperm.slane %v568, %v573
    %v576 = vunpack.c.l.s4 1983009808
    %v577 = vunpack.c.0.s8 %v576
    %v578 = vperm.slane %v570, %v577
    %v579 = vrot.slane %v550, 4
    %v580 = vsel %vm195, %v579, %v538
    %v581 = vrot.slane %v538, 4
    %v582 = vsel %vm195, %v550, %v581
    %v584 = vunpack.c.l.s4 1934713408
    %v585 = vunpack.c.0.s8 %v584
    %v586 = vperm.slane %v580, %v585
    %v588 = vunpack.c.l.s4 1934713408
    %v589 = vunpack.c.0.s8 %v588
    %v590 = vperm.slane %v582, %v589
    %v591 = vrot.slane %v554, 4
    %v592 = vsel %vm195, %v591, %v542
    %v593 = vrot.slane %v542, 4
    %v594 = vsel %vm195, %v554, %v593
    %v596 = vunpack.c.l.s4 1934713408
    %v597 = vunpack.c.0.s8 %v596
    %v598 = vperm.slane %v592, %v597
    %v600 = vunpack.c.l.s4 1934713408
    %v601 = vunpack.c.0.s8 %v600
    %v602 = vperm.slane %v594, %v601
    %v603 = vrot.slane %v574, 4
    %v604 = vsel %vm195, %v603, %v562
    %v605 = vrot.slane %v562, 4
    %v606 = vsel %vm195, %v574, %v605
    %v608 = vunpack.c.l.s4 1934713408
    %v609 = vunpack.c.0.s8 %v608
    %v610 = vperm.slane %v604, %v609
    %v612 = vunpack.c.l.s4 1934713408
    %v613 = vunpack.c.0.s8 %v612
    %v614 = vperm.slane %v606, %v613
    %v615 = vrot.slane %v578, 4
    %v616 = vsel %vm195, %v615, %v566
    %v617 = vrot.slane %v566, 4
    %v618 = vsel %vm195, %v578, %v617
    %v620 = vunpack.c.l.s4 1934713408
    %v621 = vunpack.c.0.s8 %v620
    %v622 = vperm.slane %v616, %v621
    %v624 = vunpack.c.l.s4 1934713408
    %v625 = vunpack.c.0.s8 %v624
    %v626 = vperm.slane %v618, %v625
    %v627 = vrot.slane %v610, 4
    %v628 = vsel %vm195, %v627, %v586
    %v629 = vrot.slane %v586, 4
    %v630 = vsel %vm195, %v610, %v629
    %v631 = vrot.slane %v614, 4
    %v632 = vsel %vm195, %v631, %v590
    %v633 = vrot.slane %v590, 4
    %v634 = vsel %vm195, %v614, %v633
    %v635 = vrot.slane %v622, 4
    %v636 = vsel %vm195, %v635, %v598
    %v637 = vrot.slane %v598, 4
    %v638 = vsel %vm195, %v622, %v637
    %v639 = vrot.slane %v626, 4
    %v640 = vsel %vm195, %v639, %v602
    %v641 = vrot.slane %v602, 4
    %v642 = vsel %vm195, %v626, %v641
    %645 = vrot.lane.b32.xlu0 %v143, 124
    %v646 = vpop.permute.xlu0 %645
    %647 = vrot.lane.b32.xlu0 %v146, 124
    %v648 = vpop.permute.xlu0 %647
    %649 = vrot.lane.b32.xlu0 %v143, 120
    %v650 = vpop.permute.xlu0 %649
    %651 = vrot.lane.b32.xlu0 %v146, 120
    %v652 = vpop.permute.xlu0 %651
    %653 = vrot.lane.b32.xlu0 %v143, 116
    %v654 = vpop.permute.xlu0 %653
    %655 = vrot.lane.b32.xlu0 %v146, 116
    %v656 = vpop.permute.xlu0 %655
    %657 = vrot.lane.b32.xlu0 %v143, 112
    %v658 = vpop.permute.xlu0 %657
    %659 = vrot.lane.b32.xlu0 %v146, 112
    %v660 = vpop.permute.xlu0 %659
    %661 = vrot.lane.b32.xlu0 %v143, 108
    %v662 = vpop.permute.xlu0 %661
    %663 = vrot.lane.b32.xlu0 %v146, 108
    %v664 = vpop.permute.xlu0 %663
    %665 = vrot.lane.b32.xlu0 %v143, 104
    %v666 = vpop.permute.xlu0 %665
    %667 = vrot.lane.b32.xlu0 %v146, 104
    %v668 = vpop.permute.xlu0 %667
    %669 = vrot.lane.b32.xlu0 %v143, 100
    %v670 = vpop.permute.xlu0 %669
    %671 = vrot.lane.b32.xlu0 %v146, 100
    %v672 = vpop.permute.xlu0 %671
    %673 = vrot.lane.b32.xlu0 %v143, 96
    %v674 = vpop.permute.xlu0 %673
    %675 = vrot.lane.b32.xlu0 %v146, 96
    %v676 = vpop.permute.xlu0 %675
    %677 = vrot.lane.b32.xlu0 %v646, 96
    %v678 = vpop.permute.xlu0 %677
    %679 = vrot.lane.b32.xlu0 %v648, 96
    %v680 = vpop.permute.xlu0 %679
    %681 = vrot.lane.b32.xlu0 %v650, 96
    %v682 = vpop.permute.xlu0 %681
    %683 = vrot.lane.b32.xlu0 %v652, 96
    %v684 = vpop.permute.xlu0 %683
    %685 = vrot.lane.b32.xlu0 %v654, 96
    %v686 = vpop.permute.xlu0 %685
    %687 = vrot.lane.b32.xlu0 %v656, 96
    %v688 = vpop.permute.xlu0 %687
    %689 = vrot.lane.b32.xlu0 %v658, 96
    %v690 = vpop.permute.xlu0 %689
    %691 = vrot.lane.b32.xlu0 %v660, 96
    %v692 = vpop.permute.xlu0 %691
    %693 = vrot.lane.b32.xlu0 %v662, 96
    %v694 = vpop.permute.xlu0 %693
    %695 = vrot.lane.b32.xlu0 %v664, 96
    %v696 = vpop.permute.xlu0 %695
    %697 = vrot.lane.b32.xlu0 %v666, 96
    %v698 = vpop.permute.xlu0 %697
    %699 = vrot.lane.b32.xlu0 %v668, 96
    %v700 = vpop.permute.xlu0 %699
    %701 = vrot.lane.b32.xlu0 %v670, 96
    %v702 = vpop.permute.xlu0 %701
    %703 = vrot.lane.b32.xlu0 %v672, 96
    %v704 = vpop.permute.xlu0 %703
    %v721 = vrot.slane %v682, 4
    %v722 = vsel %vm195, %v721, %v674
    %v723 = vrot.slane %v674, 4
    %v724 = vsel %vm195, %v682, %v723
    %v726 = vunpack.c.l.s4 1983009808
    %v727 = vunpack.c.0.s8 %v726
    %v728 = vperm.slane %v722, %v727
    %v730 = vunpack.c.l.s4 1983009808
    %v731 = vunpack.c.0.s8 %v730
    %v732 = vperm.slane %v724, %v731
    %v733 = vrot.slane %v686, 4
    %v734 = vsel %vm195, %v733, %v678
    %v735 = vrot.slane %v678, 4
    %v736 = vsel %vm195, %v686, %v735
    %v738 = vunpack.c.l.s4 1983009808
    %v739 = vunpack.c.0.s8 %v738
    %v740 = vperm.slane %v734, %v739
    %v742 = vunpack.c.l.s4 1983009808
    %v743 = vunpack.c.0.s8 %v742
    %v744 = vperm.slane %v736, %v743
    %v745 = vrot.slane %v698, 4
    %v746 = vsel %vm195, %v745, %v690
    %v747 = vrot.slane %v690, 4
    %v748 = vsel %vm195, %v698, %v747
    %v750 = vunpack.c.l.s4 1983009808
    %v751 = vunpack.c.0.s8 %v750
    %v752 = vperm.slane %v746, %v751
    %v754 = vunpack.c.l.s4 1983009808
    %v755 = vunpack.c.0.s8 %v754
    %v756 = vperm.slane %v748, %v755
    %v757 = vrot.slane %v702, 4
    %v758 = vsel %vm195, %v757, %v694
    %v759 = vrot.slane %v694, 4
    %v760 = vsel %vm195, %v702, %v759
    %v762 = vunpack.c.l.s4 1983009808
    %v763 = vunpack.c.0.s8 %v762
    %v764 = vperm.slane %v758, %v763
    %v766 = vunpack.c.l.s4 1983009808
    %v767 = vunpack.c.0.s8 %v766
    %v768 = vperm.slane %v760, %v767
    %v769 = vrot.slane %v740, 4
    %v770 = vsel %vm195, %v769, %v728
    %v771 = vrot.slane %v728, 4
    %v772 = vsel %vm195, %v740, %v771
    %v774 = vunpack.c.l.s4 1934713408
    %v775 = vunpack.c.0.s8 %v774
    %v776 = vperm.slane %v770, %v775
    %v778 = vunpack.c.l.s4 1934713408
    %v779 = vunpack.c.0.s8 %v778
    %v780 = vperm.slane %v772, %v779
    %v781 = vrot.slane %v744, 4
    %v782 = vsel %vm195, %v781, %v732
    %v783 = vrot.slane %v732, 4
    %v784 = vsel %vm195, %v744, %v783
    %v786 = vunpack.c.l.s4 1934713408
    %v787 = vunpack.c.0.s8 %v786
    %v788 = vperm.slane %v782, %v787
    %v790 = vunpack.c.l.s4 1934713408
    %v791 = vunpack.c.0.s8 %v790
    %v792 = vperm.slane %v784, %v791
    %v793 = vrot.slane %v764, 4
    %v794 = vsel %vm195, %v793, %v752
    %v795 = vrot.slane %v752, 4
    %v796 = vsel %vm195, %v764, %v795
    %v798 = vunpack.c.l.s4 1934713408
    %v799 = vunpack.c.0.s8 %v798
    %v800 = vperm.slane %v794, %v799
    %v802 = vunpack.c.l.s4 1934713408
    %v803 = vunpack.c.0.s8 %v802
    %v804 = vperm.slane %v796, %v803
    %v805 = vrot.slane %v768, 4
    %v806 = vsel %vm195, %v805, %v756
    %v807 = vrot.slane %v756, 4
    %v808 = vsel %vm195, %v768, %v807
    %v810 = vunpack.c.l.s4 1934713408
    %v811 = vunpack.c.0.s8 %v810
    %v812 = vperm.slane %v806, %v811
    %v814 = vunpack.c.l.s4 1934713408
    %v815 = vunpack.c.0.s8 %v814
    %v816 = vperm.slane %v808, %v815
    %v817 = vrot.slane %v800, 4
    %v818 = vsel %vm195, %v817, %v776
    %v819 = vrot.slane %v776, 4
    %v820 = vsel %vm195, %v800, %v819
    %v821 = vrot.slane %v804, 4
    %v822 = vsel %vm195, %v821, %v780
    %v823 = vrot.slane %v780, 4
    %v824 = vsel %vm195, %v804, %v823
    %v825 = vrot.slane %v812, 4
    %v826 = vsel %vm195, %v825, %v788
    %v827 = vrot.slane %v788, 4
    %v828 = vsel %vm195, %v812, %v827
    %v829 = vrot.slane %v816, 4
    %v830 = vsel %vm195, %v829, %v792
    %v831 = vrot.slane %v792, 4
    %v832 = vsel %vm195, %v816, %v831
    %v833 = vrot.slane %v684, 4
    %v834 = vsel %vm195, %v833, %v676
    %v835 = vrot.slane %v676, 4
    %v836 = vsel %vm195, %v684, %v835
    %v838 = vunpack.c.l.s4 1983009808
    %v839 = vunpack.c.0.s8 %v838
    %v840 = vperm.slane %v834, %v839
    %v842 = vunpack.c.l.s4 1983009808
    %v843 = vunpack.c.0.s8 %v842
    %v844 = vperm.slane %v836, %v843
    %v845 = vrot.slane %v688, 4
    %v846 = vsel %vm195, %v845, %v680
    %v847 = vrot.slane %v680, 4
    %v848 = vsel %vm195, %v688, %v847
    %v850 = vunpack.c.l.s4 1983009808
    %v851 = vunpack.c.0.s8 %v850
    %v852 = vperm.slane %v846, %v851
    %v854 = vunpack.c.l.s4 1983009808
    %v855 = vunpack.c.0.s8 %v854
    %v856 = vperm.slane %v848, %v855
    %v857 = vrot.slane %v700, 4
    %v858 = vsel %vm195, %v857, %v692
    %v859 = vrot.slane %v692, 4
    %v860 = vsel %vm195, %v700, %v859
    %v862 = vunpack.c.l.s4 1983009808
    %v863 = vunpack.c.0.s8 %v862
    %v864 = vperm.slane %v858, %v863
    %v866 = vunpack.c.l.s4 1983009808
    %v867 = vunpack.c.0.s8 %v866
    %v868 = vperm.slane %v860, %v867
    %v869 = vrot.slane %v704, 4
    %v870 = vsel %vm195, %v869, %v696
    %v871 = vrot.slane %v696, 4
    %v872 = vsel %vm195, %v704, %v871
    %v874 = vunpack.c.l.s4 1983009808
    %v875 = vunpack.c.0.s8 %v874
    %v876 = vperm.slane %v870, %v875
    %v878 = vunpack.c.l.s4 1983009808
    %v879 = vunpack.c.0.s8 %v878
    %v880 = vperm.slane %v872, %v879
    %v881 = vrot.slane %v852, 4
    %v882 = vsel %vm195, %v881, %v840
    %v883 = vrot.slane %v840, 4
    %v884 = vsel %vm195, %v852, %v883
    %v886 = vunpack.c.l.s4 1934713408
    %v887 = vunpack.c.0.s8 %v886
    %v888 = vperm.slane %v882, %v887
    %v890 = vunpack.c.l.s4 1934713408
    %v891 = vunpack.c.0.s8 %v890
    %v892 = vperm.slane %v884, %v891
    %v893 = vrot.slane %v856, 4
    %v894 = vsel %vm195, %v893, %v844
    %v895 = vrot.slane %v844, 4
    %v896 = vsel %vm195, %v856, %v895
    %v898 = vunpack.c.l.s4 1934713408
    %v899 = vunpack.c.0.s8 %v898
    %v900 = vperm.slane %v894, %v899
    %v902 = vunpack.c.l.s4 1934713408
    %v903 = vunpack.c.0.s8 %v902
    %v904 = vperm.slane %v896, %v903
    %v905 = vrot.slane %v876, 4
    %v906 = vsel %vm195, %v905, %v864
    %v907 = vrot.slane %v864, 4
    %v908 = vsel %vm195, %v876, %v907
    %v910 = vunpack.c.l.s4 1934713408
    %v911 = vunpack.c.0.s8 %v910
    %v912 = vperm.slane %v906, %v911
    %v914 = vunpack.c.l.s4 1934713408
    %v915 = vunpack.c.0.s8 %v914
    %v916 = vperm.slane %v908, %v915
    %v917 = vrot.slane %v880, 4
    %v918 = vsel %vm195, %v917, %v868
    %v919 = vrot.slane %v868, 4
    %v920 = vsel %vm195, %v880, %v919
    %v922 = vunpack.c.l.s4 1934713408
    %v923 = vunpack.c.0.s8 %v922
    %v924 = vperm.slane %v918, %v923
    %v926 = vunpack.c.l.s4 1934713408
    %v927 = vunpack.c.0.s8 %v926
    %v928 = vperm.slane %v920, %v927
    %v929 = vrot.slane %v912, 4
    %v930 = vsel %vm195, %v929, %v888
    %v931 = vrot.slane %v888, 4
    %v932 = vsel %vm195, %v912, %v931
    %v933 = vrot.slane %v916, 4
    %v934 = vsel %vm195, %v933, %v892
    %v935 = vrot.slane %v892, 4
    %v936 = vsel %vm195, %v916, %v935
    %v937 = vrot.slane %v924, 4
    %v938 = vsel %vm195, %v937, %v900
    %v939 = vrot.slane %v900, 4
    %v940 = vsel %vm195, %v924, %v939
    %v941 = vrot.slane %v928, 4
    %v942 = vsel %vm195, %v941, %v904
    %v943 = vrot.slane %v904, 4
    %v944 = vsel %vm195, %v928, %v943
    %v945 = vrot.slane %v822, 4
    %v946 = vsel %vm195, %v945, %v818
    %v947 = vrot.slane %v818, 4
    %v948 = vsel %vm195, %v822, %v947
    %v950 = vunpack.c.l.s4 1983009808
    %v951 = vunpack.c.0.s8 %v950
    %v952 = vperm.slane %v946, %v951
    %v954 = vunpack.c.l.s4 1983009808
    %v955 = vunpack.c.0.s8 %v954
    %v956 = vperm.slane %v948, %v955
    %v957 = vrot.slane %v824, 4
    %v958 = vsel %vm195, %v957, %v820
    %v959 = vrot.slane %v820, 4
    %v960 = vsel %vm195, %v824, %v959
    %v962 = vunpack.c.l.s4 1983009808
    %v963 = vunpack.c.0.s8 %v962
    %v964 = vperm.slane %v958, %v963
    %v966 = vunpack.c.l.s4 1983009808
    %v967 = vunpack.c.0.s8 %v966
    %v968 = vperm.slane %v960, %v967
    %v969 = vrot.slane %v830, 4
    %v970 = vsel %vm195, %v969, %v826
    %v971 = vrot.slane %v826, 4
    %v972 = vsel %vm195, %v830, %v971
    %v974 = vunpack.c.l.s4 1983009808
    %v975 = vunpack.c.0.s8 %v974
    %v976 = vperm.slane %v970, %v975
    %v978 = vunpack.c.l.s4 1983009808
    %v979 = vunpack.c.0.s8 %v978
    %v980 = vperm.slane %v972, %v979
    %v981 = vrot.slane %v832, 4
    %v982 = vsel %vm195, %v981, %v828
    %v983 = vrot.slane %v828, 4
    %v984 = vsel %vm195, %v832, %v983
    %v986 = vunpack.c.l.s4 1983009808
    %v987 = vunpack.c.0.s8 %v986
    %v988 = vperm.slane %v982, %v987
    %v990 = vunpack.c.l.s4 1983009808
    %v991 = vunpack.c.0.s8 %v990
    %v992 = vperm.slane %v984, %v991
    %v993 = vrot.slane %v964, 4
    %v994 = vsel %vm195, %v993, %v952
    %v995 = vrot.slane %v952, 4
    %v996 = vsel %vm195, %v964, %v995
    %v998 = vunpack.c.l.s4 1934713408
    %v999 = vunpack.c.0.s8 %v998
    %v1000 = vperm.slane %v994, %v999
    %v1002 = vunpack.c.l.s4 1934713408
    %v1003 = vunpack.c.0.s8 %v1002
    %v1004 = vperm.slane %v996, %v1003
    %v1005 = vrot.slane %v968, 4
    %v1006 = vsel %vm195, %v1005, %v956
    %v1007 = vrot.slane %v956, 4
    %v1008 = vsel %vm195, %v968, %v1007
    %v1010 = vunpack.c.l.s4 1934713408
    %v1011 = vunpack.c.0.s8 %v1010
    %v1012 = vperm.slane %v1006, %v1011
    %v1014 = vunpack.c.l.s4 1934713408
    %v1015 = vunpack.c.0.s8 %v1014
    %v1016 = vperm.slane %v1008, %v1015
    %v1017 = vrot.slane %v988, 4
    %v1018 = vsel %vm195, %v1017, %v976
    %v1019 = vrot.slane %v976, 4
    %v1020 = vsel %vm195, %v988, %v1019
    %v1022 = vunpack.c.l.s4 1934713408
    %v1023 = vunpack.c.0.s8 %v1022
    %v1024 = vperm.slane %v1018, %v1023
    %v1026 = vunpack.c.l.s4 1934713408
    %v1027 = vunpack.c.0.s8 %v1026
    %v1028 = vperm.slane %v1020, %v1027
    %v1029 = vrot.slane %v992, 4
    %v1030 = vsel %vm195, %v1029, %v980
    %v1031 = vrot.slane %v980, 4
    %v1032 = vsel %vm195, %v992, %v1031
    %v1034 = vunpack.c.l.s4 1934713408
    %v1035 = vunpack.c.0.s8 %v1034
    %v1036 = vperm.slane %v1030, %v1035
    %v1038 = vunpack.c.l.s4 1934713408
    %v1039 = vunpack.c.0.s8 %v1038
    %v1040 = vperm.slane %v1032, %v1039
    %v1041 = vrot.slane %v1024, 4
    %v1042 = vsel %vm195, %v1041, %v1000
    %v1043 = vrot.slane %v1000, 4
    %v1044 = vsel %vm195, %v1024, %v1043
    %v1045 = vrot.slane %v1028, 4
    %v1046 = vsel %vm195, %v1045, %v1004
    %v1047 = vrot.slane %v1004, 4
    %v1048 = vsel %vm195, %v1028, %v1047
    %v1049 = vrot.slane %v1036, 4
    %v1050 = vsel %vm195, %v1049, %v1012
    %v1051 = vrot.slane %v1012, 4
    %v1052 = vsel %vm195, %v1036, %v1051
    %v1053 = vrot.slane %v1040, 4
    %v1054 = vsel %vm195, %v1053, %v1016
    %v1055 = vrot.slane %v1016, 4
    %v1056 = vsel %vm195, %v1040, %v1055
    %v1057 = vrot.slane %v934, 4
    %v1058 = vsel %vm195, %v1057, %v930
    %v1059 = vrot.slane %v930, 4
    %v1060 = vsel %vm195, %v934, %v1059
    %v1062 = vunpack.c.l.s4 1983009808
    %v1063 = vunpack.c.0.s8 %v1062
    %v1064 = vperm.slane %v1058, %v1063
    %v1066 = vunpack.c.l.s4 1983009808
    %v1067 = vunpack.c.0.s8 %v1066
    %v1068 = vperm.slane %v1060, %v1067
    %v1069 = vrot.slane %v936, 4
    %v1070 = vsel %vm195, %v1069, %v932
    %v1071 = vrot.slane %v932, 4
    %v1072 = vsel %vm195, %v936, %v1071
    %v1074 = vunpack.c.l.s4 1983009808
    %v1075 = vunpack.c.0.s8 %v1074
    %v1076 = vperm.slane %v1070, %v1075
    %v1078 = vunpack.c.l.s4 1983009808
    %v1079 = vunpack.c.0.s8 %v1078
    %v1080 = vperm.slane %v1072, %v1079
    %v1081 = vrot.slane %v942, 4
    %v1082 = vsel %vm195, %v1081, %v938
    %v1083 = vrot.slane %v938, 4
    %v1084 = vsel %vm195, %v942, %v1083
    %v1086 = vunpack.c.l.s4 1983009808
    %v1087 = vunpack.c.0.s8 %v1086
    %v1088 = vperm.slane %v1082, %v1087
    %v1090 = vunpack.c.l.s4 1983009808
    %v1091 = vunpack.c.0.s8 %v1090
    %v1092 = vperm.slane %v1084, %v1091
    %v1093 = vrot.slane %v944, 4
    %v1094 = vsel %vm195, %v1093, %v940
    %v1095 = vrot.slane %v940, 4
    %v1096 = vsel %vm195, %v944, %v1095
    %v1098 = vunpack.c.l.s4 1983009808
    %v1099 = vunpack.c.0.s8 %v1098
    %v1100 = vperm.slane %v1094, %v1099
    %v1102 = vunpack.c.l.s4 1983009808
    %v1103 = vunpack.c.0.s8 %v1102
    %v1104 = vperm.slane %v1096, %v1103
    %v1105 = vrot.slane %v1076, 4
    %v1106 = vsel %vm195, %v1105, %v1064
    %v1107 = vrot.slane %v1064, 4
    %v1108 = vsel %vm195, %v1076, %v1107
    %v1110 = vunpack.c.l.s4 1934713408
    %v1111 = vunpack.c.0.s8 %v1110
    %v1112 = vperm.slane %v1106, %v1111
    %v1114 = vunpack.c.l.s4 1934713408
    %v1115 = vunpack.c.0.s8 %v1114
    %v1116 = vperm.slane %v1108, %v1115
    %v1117 = vrot.slane %v1080, 4
    %v1118 = vsel %vm195, %v1117, %v1068
    %v1119 = vrot.slane %v1068, 4
    %v1120 = vsel %vm195, %v1080, %v1119
    %v1122 = vunpack.c.l.s4 1934713408
    %v1123 = vunpack.c.0.s8 %v1122
    %v1124 = vperm.slane %v1118, %v1123
    %v1126 = vunpack.c.l.s4 1934713408
    %v1127 = vunpack.c.0.s8 %v1126
    %v1128 = vperm.slane %v1120, %v1127
    %v1129 = vrot.slane %v1100, 4
    %v1130 = vsel %vm195, %v1129, %v1088
    %v1131 = vrot.slane %v1088, 4
    %v1132 = vsel %vm195, %v1100, %v1131
    %v1134 = vunpack.c.l.s4 1934713408
    %v1135 = vunpack.c.0.s8 %v1134
    %v1136 = vperm.slane %v1130, %v1135
    %v1138 = vunpack.c.l.s4 1934713408
    %v1139 = vunpack.c.0.s8 %v1138
    %v1140 = vperm.slane %v1132, %v1139
    %v1141 = vrot.slane %v1104, 4
    %v1142 = vsel %vm195, %v1141, %v1092
    %v1143 = vrot.slane %v1092, 4
    %v1144 = vsel %vm195, %v1104, %v1143
    %v1146 = vunpack.c.l.s4 1934713408
    %v1147 = vunpack.c.0.s8 %v1146
    %v1148 = vperm.slane %v1142, %v1147
    %v1150 = vunpack.c.l.s4 1934713408
    %v1151 = vunpack.c.0.s8 %v1150
    %v1152 = vperm.slane %v1144, %v1151
    %v1153 = vrot.slane %v1136, 4
    %v1154 = vsel %vm195, %v1153, %v1112
    %v1155 = vrot.slane %v1112, 4
    %v1156 = vsel %vm195, %v1136, %v1155
    %v1157 = vrot.slane %v1140, 4
    %v1158 = vsel %vm195, %v1157, %v1116
    %v1159 = vrot.slane %v1116, 4
    %v1160 = vsel %vm195, %v1140, %v1159
    %v1161 = vrot.slane %v1148, 4
    %v1162 = vsel %vm195, %v1161, %v1124
    %v1163 = vrot.slane %v1124, 4
    %v1164 = vsel %vm195, %v1148, %v1163
    %v1165 = vrot.slane %v1152, 4
    %v1166 = vsel %vm195, %v1165, %v1128
    %v1167 = vrot.slane %v1128, 4
    %v1168 = vsel %vm195, %v1152, %v1167
    %1169 = vrot.lane.b32.xlu0 %v143, 64
    %v1170 = vpop.permute.xlu0 %1169
    %1171 = vrot.lane.b32.xlu0 %v146, 64
    %v1172 = vpop.permute.xlu0 %1171
    %1173 = vrot.lane.b32.xlu0 %v646, 64
    %v1174 = vpop.permute.xlu0 %1173
    %1175 = vrot.lane.b32.xlu0 %v648, 64
    %v1176 = vpop.permute.xlu0 %1175
    %1177 = vrot.lane.b32.xlu0 %v650, 64
    %v1178 = vpop.permute.xlu0 %1177
    %1179 = vrot.lane.b32.xlu0 %v652, 64
    %v1180 = vpop.permute.xlu0 %1179
    %1181 = vrot.lane.b32.xlu0 %v654, 64
    %v1182 = vpop.permute.xlu0 %1181
    %1183 = vrot.lane.b32.xlu0 %v656, 64
    %v1184 = vpop.permute.xlu0 %1183
    %1185 = vrot.lane.b32.xlu0 %v658, 64
    %v1186 = vpop.permute.xlu0 %1185
    %1187 = vrot.lane.b32.xlu0 %v660, 64
    %v1188 = vpop.permute.xlu0 %1187
    %1189 = vrot.lane.b32.xlu0 %v662, 64
    %v1190 = vpop.permute.xlu0 %1189
    %1191 = vrot.lane.b32.xlu0 %v664, 64
    %v1192 = vpop.permute.xlu0 %1191
    %1193 = vrot.lane.b32.xlu0 %v666, 64
    %v1194 = vpop.permute.xlu0 %1193
    %1195 = vrot.lane.b32.xlu0 %v668, 64
    %v1196 = vpop.permute.xlu0 %1195
    %1197 = vrot.lane.b32.xlu0 %v670, 64
    %v1198 = vpop.permute.xlu0 %1197
    %1199 = vrot.lane.b32.xlu0 %v672, 64
    %v1200 = vpop.permute.xlu0 %1199
    %v1217 = vrot.slane %v1178, 4
    %v1218 = vsel %vm195, %v1217, %v1170
    %v1219 = vrot.slane %v1170, 4
    %v1220 = vsel %vm195, %v1178, %v1219
    %v1222 = vunpack.c.l.s4 1983009808
    %v1223 = vunpack.c.0.s8 %v1222
    %v1224 = vperm.slane %v1218, %v1223
    %v1226 = vunpack.c.l.s4 1983009808
    %v1227 = vunpack.c.0.s8 %v1226
    %v1228 = vperm.slane %v1220, %v1227
    %v1229 = vrot.slane %v1182, 4
    %v1230 = vsel %vm195, %v1229, %v1174
    %v1231 = vrot.slane %v1174, 4
    %v1232 = vsel %vm195, %v1182, %v1231
    %v1234 = vunpack.c.l.s4 1983009808
    %v1235 = vunpack.c.0.s8 %v1234
    %v1236 = vperm.slane %v1230, %v1235
    %v1238 = vunpack.c.l.s4 1983009808
    %v1239 = vunpack.c.0.s8 %v1238
    %v1240 = vperm.slane %v1232, %v1239
    %v1241 = vrot.slane %v1194, 4
    %v1242 = vsel %vm195, %v1241, %v1186
    %v1243 = vrot.slane %v1186, 4
    %v1244 = vsel %vm195, %v1194, %v1243
    %v1246 = vunpack.c.l.s4 1983009808
    %v1247 = vunpack.c.0.s8 %v1246
    %v1248 = vperm.slane %v1242, %v1247
    %v1250 = vunpack.c.l.s4 1983009808
    %v1251 = vunpack.c.0.s8 %v1250
    %v1252 = vperm.slane %v1244, %v1251
    %v1253 = vrot.slane %v1198, 4
    %v1254 = vsel %vm195, %v1253, %v1190
    %v1255 = vrot.slane %v1190, 4
    %v1256 = vsel %vm195, %v1198, %v1255
    %v1258 = vunpack.c.l.s4 1983009808
    %v1259 = vunpack.c.0.s8 %v1258
    %v1260 = vperm.slane %v1254, %v1259
    %v1262 = vunpack.c.l.s4 1983009808
    %v1263 = vunpack.c.0.s8 %v1262
    %v1264 = vperm.slane %v1256, %v1263
    %v1265 = vrot.slane %v1236, 4
    %v1266 = vsel %vm195, %v1265, %v1224
    %v1267 = vrot.slane %v1224, 4
    %v1268 = vsel %vm195, %v1236, %v1267
    %v1270 = vunpack.c.l.s4 1934713408
    %v1271 = vunpack.c.0.s8 %v1270
    %v1272 = vperm.slane %v1266, %v1271
    %v1274 = vunpack.c.l.s4 1934713408
    %v1275 = vunpack.c.0.s8 %v1274
    %v1276 = vperm.slane %v1268, %v1275
    %v1277 = vrot.slane %v1240, 4
    %v1278 = vsel %vm195, %v1277, %v1228
    %v1279 = vrot.slane %v1228, 4
    %v1280 = vsel %vm195, %v1240, %v1279
    %v1282 = vunpack.c.l.s4 1934713408
    %v1283 = vunpack.c.0.s8 %v1282
    %v1284 = vperm.slane %v1278, %v1283
    %v1286 = vunpack.c.l.s4 1934713408
    %v1287 = vunpack.c.0.s8 %v1286
    %v1288 = vperm.slane %v1280, %v1287
    %v1289 = vrot.slane %v1260, 4
    %v1290 = vsel %vm195, %v1289, %v1248
    %v1291 = vrot.slane %v1248, 4
    %v1292 = vsel %vm195, %v1260, %v1291
    %v1294 = vunpack.c.l.s4 1934713408
    %v1295 = vunpack.c.0.s8 %v1294
    %v1296 = vperm.slane %v1290, %v1295
    %v1298 = vunpack.c.l.s4 1934713408
    %v1299 = vunpack.c.0.s8 %v1298
    %v1300 = vperm.slane %v1292, %v1299
    %v1301 = vrot.slane %v1264, 4
    %v1302 = vsel %vm195, %v1301, %v1252
    %v1303 = vrot.slane %v1252, 4
    %v1304 = vsel %vm195, %v1264, %v1303
    %v1306 = vunpack.c.l.s4 1934713408
    %v1307 = vunpack.c.0.s8 %v1306
    %v1308 = vperm.slane %v1302, %v1307
    %v1310 = vunpack.c.l.s4 1934713408
    %v1311 = vunpack.c.0.s8 %v1310
    %v1312 = vperm.slane %v1304, %v1311
    %v1313 = vrot.slane %v1296, 4
    %v1314 = vsel %vm195, %v1313, %v1272
    %v1315 = vrot.slane %v1272, 4
    %v1316 = vsel %vm195, %v1296, %v1315
    %v1317 = vrot.slane %v1300, 4
    %v1318 = vsel %vm195, %v1317, %v1276
    %v1319 = vrot.slane %v1276, 4
    %v1320 = vsel %vm195, %v1300, %v1319
    %v1321 = vrot.slane %v1308, 4
    %v1322 = vsel %vm195, %v1321, %v1284
    %v1323 = vrot.slane %v1284, 4
    %v1324 = vsel %vm195, %v1308, %v1323
    %v1325 = vrot.slane %v1312, 4
    %v1326 = vsel %vm195, %v1325, %v1288
    %v1327 = vrot.slane %v1288, 4
    %v1328 = vsel %vm195, %v1312, %v1327
    %v1329 = vrot.slane %v1180, 4
    %v1330 = vsel %vm195, %v1329, %v1172
    %v1331 = vrot.slane %v1172, 4
    %v1332 = vsel %vm195, %v1180, %v1331
    %v1334 = vunpack.c.l.s4 1983009808
    %v1335 = vunpack.c.0.s8 %v1334
    %v1336 = vperm.slane %v1330, %v1335
    %v1338 = vunpack.c.l.s4 1983009808
    %v1339 = vunpack.c.0.s8 %v1338
    %v1340 = vperm.slane %v1332, %v1339
    %v1341 = vrot.slane %v1184, 4
    %v1342 = vsel %vm195, %v1341, %v1176
    %v1343 = vrot.slane %v1176, 4
    %v1344 = vsel %vm195, %v1184, %v1343
    %v1346 = vunpack.c.l.s4 1983009808
    %v1347 = vunpack.c.0.s8 %v1346
    %v1348 = vperm.slane %v1342, %v1347
    %v1350 = vunpack.c.l.s4 1983009808
    %v1351 = vunpack.c.0.s8 %v1350
    %v1352 = vperm.slane %v1344, %v1351
    %v1353 = vrot.slane %v1196, 4
    %v1354 = vsel %vm195, %v1353, %v1188
    %v1355 = vrot.slane %v1188, 4
    %v1356 = vsel %vm195, %v1196, %v1355
    %v1358 = vunpack.c.l.s4 1983009808
    %v1359 = vunpack.c.0.s8 %v1358
    %v1360 = vperm.slane %v1354, %v1359
    %v1362 = vunpack.c.l.s4 1983009808
    %v1363 = vunpack.c.0.s8 %v1362
    %v1364 = vperm.slane %v1356, %v1363
    %v1365 = vrot.slane %v1200, 4
    %v1366 = vsel %vm195, %v1365, %v1192
    %v1367 = vrot.slane %v1192, 4
    %v1368 = vsel %vm195, %v1200, %v1367
    %v1370 = vunpack.c.l.s4 1983009808
    %v1371 = vunpack.c.0.s8 %v1370
    %v1372 = vperm.slane %v1366, %v1371
    %v1374 = vunpack.c.l.s4 1983009808
    %v1375 = vunpack.c.0.s8 %v1374
    %v1376 = vperm.slane %v1368, %v1375
    %v1377 = vrot.slane %v1348, 4
    %v1378 = vsel %vm195, %v1377, %v1336
    %v1379 = vrot.slane %v1336, 4
    %v1380 = vsel %vm195, %v1348, %v1379
    %v1382 = vunpack.c.l.s4 1934713408
    %v1383 = vunpack.c.0.s8 %v1382
    %v1384 = vperm.slane %v1378, %v1383
    %v1386 = vunpack.c.l.s4 1934713408
    %v1387 = vunpack.c.0.s8 %v1386
    %v1388 = vperm.slane %v1380, %v1387
    %v1389 = vrot.slane %v1352, 4
    %v1390 = vsel %vm195, %v1389, %v1340
    %v1391 = vrot.slane %v1340, 4
    %v1392 = vsel %vm195, %v1352, %v1391
    %v1394 = vunpack.c.l.s4 1934713408
    %v1395 = vunpack.c.0.s8 %v1394
    %v1396 = vperm.slane %v1390, %v1395
    %v1398 = vunpack.c.l.s4 1934713408
    %v1399 = vunpack.c.0.s8 %v1398
    %v1400 = vperm.slane %v1392, %v1399
    %v1401 = vrot.slane %v1372, 4
    %v1402 = vsel %vm195, %v1401, %v1360
    %v1403 = vrot.slane %v1360, 4
    %v1404 = vsel %vm195, %v1372, %v1403
    %v1406 = vunpack.c.l.s4 1934713408
    %v1407 = vunpack.c.0.s8 %v1406
    %v1408 = vperm.slane %v1402, %v1407
    %v1410 = vunpack.c.l.s4 1934713408
    %v1411 = vunpack.c.0.s8 %v1410
    %v1412 = vperm.slane %v1404, %v1411
    %v1413 = vrot.slane %v1376, 4
    %v1414 = vsel %vm195, %v1413, %v1364
    %v1415 = vrot.slane %v1364, 4
    %v1416 = vsel %vm195, %v1376, %v1415
    %v1418 = vunpack.c.l.s4 1934713408
    %v1419 = vunpack.c.0.s8 %v1418
    %v1420 = vperm.slane %v1414, %v1419
    %v1422 = vunpack.c.l.s4 1934713408
    %v1423 = vunpack.c.0.s8 %v1422
    %v1424 = vperm.slane %v1416, %v1423
    %v1425 = vrot.slane %v1408, 4
    %v1426 = vsel %vm195, %v1425, %v1384
    %v1427 = vrot.slane %v1384, 4
    %v1428 = vsel %vm195, %v1408, %v1427
    %v1429 = vrot.slane %v1412, 4
    %v1430 = vsel %vm195, %v1429, %v1388
    %v1431 = vrot.slane %v1388, 4
    %v1432 = vsel %vm195, %v1412, %v1431
    %v1433 = vrot.slane %v1420, 4
    %v1434 = vsel %vm195, %v1433, %v1396
    %v1435 = vrot.slane %v1396, 4
    %v1436 = vsel %vm195, %v1420, %v1435
    %v1437 = vrot.slane %v1424, 4
    %v1438 = vsel %vm195, %v1437, %v1400
    %v1439 = vrot.slane %v1400, 4
    %v1440 = vsel %vm195, %v1424, %v1439
    %v1441 = vrot.slane %v1318, 4
    %v1442 = vsel %vm195, %v1441, %v1314
    %v1443 = vrot.slane %v1314, 4
    %v1444 = vsel %vm195, %v1318, %v1443
    %v1446 = vunpack.c.l.s4 1983009808
    %v1447 = vunpack.c.0.s8 %v1446
    %v1448 = vperm.slane %v1442, %v1447
    %v1450 = vunpack.c.l.s4 1983009808
    %v1451 = vunpack.c.0.s8 %v1450
    %v1452 = vperm.slane %v1444, %v1451
    %v1453 = vrot.slane %v1320, 4
    %v1454 = vsel %vm195, %v1453, %v1316
    %v1455 = vrot.slane %v1316, 4
    %v1456 = vsel %vm195, %v1320, %v1455
    %v1458 = vunpack.c.l.s4 1983009808
    %v1459 = vunpack.c.0.s8 %v1458
    %v1460 = vperm.slane %v1454, %v1459
    %v1462 = vunpack.c.l.s4 1983009808
    %v1463 = vunpack.c.0.s8 %v1462
    %v1464 = vperm.slane %v1456, %v1463
    %v1465 = vrot.slane %v1326, 4
    %v1466 = vsel %vm195, %v1465, %v1322
    %v1467 = vrot.slane %v1322, 4
    %v1468 = vsel %vm195, %v1326, %v1467
    %v1470 = vunpack.c.l.s4 1983009808
    %v1471 = vunpack.c.0.s8 %v1470
    %v1472 = vperm.slane %v1466, %v1471
    %v1474 = vunpack.c.l.s4 1983009808
    %v1475 = vunpack.c.0.s8 %v1474
    %v1476 = vperm.slane %v1468, %v1475
    %v1477 = vrot.slane %v1328, 4
    %v1478 = vsel %vm195, %v1477, %v1324
    %v1479 = vrot.slane %v1324, 4
    %v1480 = vsel %vm195, %v1328, %v1479
    %v1482 = vunpack.c.l.s4 1983009808
    %v1483 = vunpack.c.0.s8 %v1482
    %v1484 = vperm.slane %v1478, %v1483
    %v1486 = vunpack.c.l.s4 1983009808
    %v1487 = vunpack.c.0.s8 %v1486
    %v1488 = vperm.slane %v1480, %v1487
    %v1489 = vrot.slane %v1460, 4
    %v1490 = vsel %vm195, %v1489, %v1448
    %v1491 = vrot.slane %v1448, 4
    %v1492 = vsel %vm195, %v1460, %v1491
    %v1494 = vunpack.c.l.s4 1934713408
    %v1495 = vunpack.c.0.s8 %v1494
    %v1496 = vperm.slane %v1490, %v1495
    %v1498 = vunpack.c.l.s4 1934713408
    %v1499 = vunpack.c.0.s8 %v1498
    %v1500 = vperm.slane %v1492, %v1499
    %v1501 = vrot.slane %v1464, 4
    %v1502 = vsel %vm195, %v1501, %v1452
    %v1503 = vrot.slane %v1452, 4
    %v1504 = vsel %vm195, %v1464, %v1503
    %v1506 = vunpack.c.l.s4 1934713408
    %v1507 = vunpack.c.0.s8 %v1506
    %v1508 = vperm.slane %v1502, %v1507
    %v1510 = vunpack.c.l.s4 1934713408
    %v1511 = vunpack.c.0.s8 %v1510
    %v1512 = vperm.slane %v1504, %v1511
    %v1513 = vrot.slane %v1484, 4
    %v1514 = vsel %vm195, %v1513, %v1472
    %v1515 = vrot.slane %v1472, 4
    %v1516 = vsel %vm195, %v1484, %v1515
    %v1518 = vunpack.c.l.s4 1934713408
    %v1519 = vunpack.c.0.s8 %v1518
    %v1520 = vperm.slane %v1514, %v1519
    %v1522 = vunpack.c.l.s4 1934713408
    %v1523 = vunpack.c.0.s8 %v1522
    %v1524 = vperm.slane %v1516, %v1523
    %v1525 = vrot.slane %v1488, 4
    %v1526 = vsel %vm195, %v1525, %v1476
    %v1527 = vrot.slane %v1476, 4
    %v1528 = vsel %vm195, %v1488, %v1527
    %v1530 = vunpack.c.l.s4 1934713408
    %v1531 = vunpack.c.0.s8 %v1530
    %v1532 = vperm.slane %v1526, %v1531
    %v1534 = vunpack.c.l.s4 1934713408
    %v1535 = vunpack.c.0.s8 %v1534
    %v1536 = vperm.slane %v1528, %v1535
    %v1537 = vrot.slane %v1520, 4
    %v1538 = vsel %vm195, %v1537, %v1496
    %v1539 = vrot.slane %v1496, 4
    %v1540 = vsel %vm195, %v1520, %v1539
    %v1541 = vrot.slane %v1524, 4
    %v1542 = vsel %vm195, %v1541, %v1500
    %v1543 = vrot.slane %v1500, 4
    %v1544 = vsel %vm195, %v1524, %v1543
    %v1545 = vrot.slane %v1532, 4
    %v1546 = vsel %vm195, %v1545, %v1508
    %v1547 = vrot.slane %v1508, 4
    %v1548 = vsel %vm195, %v1532, %v1547
    %v1549 = vrot.slane %v1536, 4
    %v1550 = vsel %vm195, %v1549, %v1512
    %v1551 = vrot.slane %v1512, 4
    %v1552 = vsel %vm195, %v1536, %v1551
    %v1553 = vrot.slane %v1430, 4
    %v1554 = vsel %vm195, %v1553, %v1426
    %v1555 = vrot.slane %v1426, 4
    %v1556 = vsel %vm195, %v1430, %v1555
    %v1558 = vunpack.c.l.s4 1983009808
    %v1559 = vunpack.c.0.s8 %v1558
    %v1560 = vperm.slane %v1554, %v1559
    %v1562 = vunpack.c.l.s4 1983009808
    %v1563 = vunpack.c.0.s8 %v1562
    %v1564 = vperm.slane %v1556, %v1563
    %v1565 = vrot.slane %v1432, 4
    %v1566 = vsel %vm195, %v1565, %v1428
    %v1567 = vrot.slane %v1428, 4
    %v1568 = vsel %vm195, %v1432, %v1567
    %v1570 = vunpack.c.l.s4 1983009808
    %v1571 = vunpack.c.0.s8 %v1570
    %v1572 = vperm.slane %v1566, %v1571
    %v1574 = vunpack.c.l.s4 1983009808
    %v1575 = vunpack.c.0.s8 %v1574
    %v1576 = vperm.slane %v1568, %v1575
    %v1577 = vrot.slane %v1438, 4
    %v1578 = vsel %vm195, %v1577, %v1434
    %v1579 = vrot.slane %v1434, 4
    %v1580 = vsel %vm195, %v1438, %v1579
    %v1582 = vunpack.c.l.s4 1983009808
    %v1583 = vunpack.c.0.s8 %v1582
    %v1584 = vperm.slane %v1578, %v1583
    %v1586 = vunpack.c.l.s4 1983009808
    %v1587 = vunpack.c.0.s8 %v1586
    %v1588 = vperm.slane %v1580, %v1587
    %v1589 = vrot.slane %v1440, 4
    %v1590 = vsel %vm195, %v1589, %v1436
    %v1591 = vrot.slane %v1436, 4
    %v1592 = vsel %vm195, %v1440, %v1591
    %v1594 = vunpack.c.l.s4 1983009808
    %v1595 = vunpack.c.0.s8 %v1594
    %v1596 = vperm.slane %v1590, %v1595
    %v1598 = vunpack.c.l.s4 1983009808
    %v1599 = vunpack.c.0.s8 %v1598
    %v1600 = vperm.slane %v1592, %v1599
    %v1601 = vrot.slane %v1572, 4
    %v1602 = vsel %vm195, %v1601, %v1560
    %v1603 = vrot.slane %v1560, 4
    %v1604 = vsel %vm195, %v1572, %v1603
    %v1606 = vunpack.c.l.s4 1934713408
    %v1607 = vunpack.c.0.s8 %v1606
    %v1608 = vperm.slane %v1602, %v1607
    %v1610 = vunpack.c.l.s4 1934713408
    %v1611 = vunpack.c.0.s8 %v1610
    %v1612 = vperm.slane %v1604, %v1611
    %v1613 = vrot.slane %v1576, 4
    %v1614 = vsel %vm195, %v1613, %v1564
    %v1615 = vrot.slane %v1564, 4
    %v1616 = vsel %vm195, %v1576, %v1615
    %v1618 = vunpack.c.l.s4 1934713408
    %v1619 = vunpack.c.0.s8 %v1618
    %v1620 = vperm.slane %v1614, %v1619
    %v1622 = vunpack.c.l.s4 1934713408
    %v1623 = vunpack.c.0.s8 %v1622
    %v1624 = vperm.slane %v1616, %v1623
    %v1625 = vrot.slane %v1596, 4
    %v1626 = vsel %vm195, %v1625, %v1584
    %v1627 = vrot.slane %v1584, 4
    %v1628 = vsel %vm195, %v1596, %v1627
    %v1630 = vunpack.c.l.s4 1934713408
    %v1631 = vunpack.c.0.s8 %v1630
    %v1632 = vperm.slane %v1626, %v1631
    %v1634 = vunpack.c.l.s4 1934713408
    %v1635 = vunpack.c.0.s8 %v1634
    %v1636 = vperm.slane %v1628, %v1635
    %v1637 = vrot.slane %v1600, 4
    %v1638 = vsel %vm195, %v1637, %v1588
    %v1639 = vrot.slane %v1588, 4
    %v1640 = vsel %vm195, %v1600, %v1639
    %v1642 = vunpack.c.l.s4 1934713408
    %v1643 = vunpack.c.0.s8 %v1642
    %v1644 = vperm.slane %v1638, %v1643
    %v1646 = vunpack.c.l.s4 1934713408
    %v1647 = vunpack.c.0.s8 %v1646
    %v1648 = vperm.slane %v1640, %v1647
    %v1649 = vrot.slane %v1632, 4
    %v1650 = vsel %vm195, %v1649, %v1608
    %v1651 = vrot.slane %v1608, 4
    %v1652 = vsel %vm195, %v1632, %v1651
    %v1653 = vrot.slane %v1636, 4
    %v1654 = vsel %vm195, %v1653, %v1612
    %v1655 = vrot.slane %v1612, 4
    %v1656 = vsel %vm195, %v1636, %v1655
    %v1657 = vrot.slane %v1644, 4
    %v1658 = vsel %vm195, %v1657, %v1620
    %v1659 = vrot.slane %v1620, 4
    %v1660 = vsel %vm195, %v1644, %v1659
    %v1661 = vrot.slane %v1648, 4
    %v1662 = vsel %vm195, %v1661, %v1624
    %v1663 = vrot.slane %v1624, 4
    %v1664 = vsel %vm195, %v1648, %v1663
    %vm1665 = vcmask 31744
    %v1667 = vsel %vm1665, %v516, 0
    %v1670 = vsel %vm1665, %v1042, 0
    %1672 = vmatpush.xpose.msra.mxu0 0.0
    %1673 = vmatpush.xpose.msra.mxu0 0.0
    %1674 = vmatpush.xpose.msra.mxu0 0.0
    %1675 = vmatpush.xpose.msra.mxu0 0.0
    %1676 = vmatpush.xpose.msra.mxu0 0.0
    %1677 = vmatpush.xpose.msra.mxu0 0.0
    %1678 = vmatpush.xpose.msra.mxu0 0.0
    %1679 = vmatpush.xpose.msra.mxu0 0.0
    %1680 = vmatpush.xpose.msra.mxu0 0.0
    %1681 = vmatpush.xpose.msra.mxu0 0.0
    %1682 = vmatpush.xpose.msra.mxu0 0.0
    %1683 = vmatpush.xpose.msra.mxu0 0.0
    %1684 = vmatpush.xpose.msra.mxu0 0.0
    %1685 = vmatpush.xpose.msra.mxu0 0.0
    %1686 = vmatpush.xpose.msra.mxu0 0.0
    %1687 = vmatpush.xpose.msra.mxu0 %v1670
    %1688 = vmatmul.f32.gmra.mxu0 %v1667
    %v1689 = vpop.f32.mrf.mxu0
    %v1690 = vadd.f32 0.0, %v1689
    %1691 = vdwg.mxu0
    %v1693 = vsel %vm1665, %v518, 0
    %v1696 = vsel %vm1665, %v1044, 0
    %1698 = vmatpush.xpose.msra.mxu0 0.0
    %1699 = vmatpush.xpose.msra.mxu0 0.0
    %1700 = vmatpush.xpose.msra.mxu0 0.0
    %1701 = vmatpush.xpose.msra.mxu0 0.0
    %1702 = vmatpush.xpose.msra.mxu0 0.0
    %1703 = vmatpush.xpose.msra.mxu0 0.0
    %1704 = vmatpush.xpose.msra.mxu0 0.0
    %1705 = vmatpush.xpose.msra.mxu0 0.0
    %1706 = vmatpush.xpose.msra.mxu0 0.0
    %1707 = vmatpush.xpose.msra.mxu0 0.0
    %1708 = vmatpush.xpose.msra.mxu0 0.0
    %1709 = vmatpush.xpose.msra.mxu0 0.0
    %1710 = vmatpush.xpose.msra.mxu0 0.0
    %1711 = vmatpush.xpose.msra.mxu0 0.0
    %1712 = vmatpush.xpose.msra.mxu0 0.0
    %1713 = vmatpush.xpose.msra.mxu0 %v1696
    %1714 = vmatmul.f32.gmra.mxu0 %v1693
    %v1715 = vpop.f32.mrf.mxu0
    %v1716 = vadd.f32 0.0, %v1715
    %1717 = vdwg.mxu0
    %v1719 = vsel %vm1665, %v520, 0
    %v1722 = vsel %vm1665, %v1046, 0
    %1724 = vmatpush.xpose.msra.mxu0 0.0
    %1725 = vmatpush.xpose.msra.mxu0 0.0
    %1726 = vmatpush.xpose.msra.mxu0 0.0
    %1727 = vmatpush.xpose.msra.mxu0 0.0
    %1728 = vmatpush.xpose.msra.mxu0 0.0
    %1729 = vmatpush.xpose.msra.mxu0 0.0
    %1730 = vmatpush.xpose.msra.mxu0 0.0
    %1731 = vmatpush.xpose.msra.mxu0 0.0
    %1732 = vmatpush.xpose.msra.mxu0 0.0
    %1733 = vmatpush.xpose.msra.mxu0 0.0
    %1734 = vmatpush.xpose.msra.mxu0 0.0
    %1735 = vmatpush.xpose.msra.mxu0 0.0
    %1736 = vmatpush.xpose.msra.mxu0 0.0
    %1737 = vmatpush.xpose.msra.mxu0 0.0
    %1738 = vmatpush.xpose.msra.mxu0 0.0
    %1739 = vmatpush.xpose.msra.mxu0 %v1722
    %1740 = vmatmul.f32.gmra.mxu0 %v1719
    %v1741 = vpop.f32.mrf.mxu0
    %v1742 = vadd.f32 0.0, %v1741
    %1743 = vdwg.mxu0
    %v1745 = vsel %vm1665, %v522, 0
    %v1748 = vsel %vm1665, %v1048, 0
    %1750 = vmatpush.xpose.msra.mxu0 0.0
    %1751 = vmatpush.xpose.msra.mxu0 0.0
    %1752 = vmatpush.xpose.msra.mxu0 0.0
    %1753 = vmatpush.xpose.msra.mxu0 0.0
    %1754 = vmatpush.xpose.msra.mxu0 0.0
    %1755 = vmatpush.xpose.msra.mxu0 0.0
    %1756 = vmatpush.xpose.msra.mxu0 0.0
    %1757 = vmatpush.xpose.msra.mxu0 0.0
    %1758 = vmatpush.xpose.msra.mxu0 0.0
    %1759 = vmatpush.xpose.msra.mxu0 0.0
    %1760 = vmatpush.xpose.msra.mxu0 0.0
    %1761 = vmatpush.xpose.msra.mxu0 0.0
    %1762 = vmatpush.xpose.msra.mxu0 0.0
    %1763 = vmatpush.xpose.msra.mxu0 0.0
    %1764 = vmatpush.xpose.msra.mxu0 0.0
    %1765 = vmatpush.xpose.msra.mxu0 %v1748
    %1766 = vmatmul.f32.gmra.mxu0 %v1745
    %v1767 = vpop.f32.mrf.mxu0
    %v1768 = vadd.f32 0.0, %v1767
    %1769 = vdwg.mxu0
    %v1771 = vsel %vm1665, %v524, 0
    %v1774 = vsel %vm1665, %v1050, 0
    %1776 = vmatpush.xpose.msra.mxu0 0.0
    %1777 = vmatpush.xpose.msra.mxu0 0.0
    %1778 = vmatpush.xpose.msra.mxu0 0.0
    %1779 = vmatpush.xpose.msra.mxu0 0.0
    %1780 = vmatpush.xpose.msra.mxu0 0.0
    %1781 = vmatpush.xpose.msra.mxu0 0.0
    %1782 = vmatpush.xpose.msra.mxu0 0.0
    %1783 = vmatpush.xpose.msra.mxu0 0.0
    %1784 = vmatpush.xpose.msra.mxu0 0.0
    %1785 = vmatpush.xpose.msra.mxu0 0.0
    %1786 = vmatpush.xpose.msra.mxu0 0.0
    %1787 = vmatpush.xpose.msra.mxu0 0.0
    %1788 = vmatpush.xpose.msra.mxu0 0.0
    %1789 = vmatpush.xpose.msra.mxu0 0.0
    %1790 = vmatpush.xpose.msra.mxu0 0.0
    %1791 = vmatpush.xpose.msra.mxu0 %v1774
    %1792 = vmatmul.f32.gmra.mxu0 %v1771
    %v1793 = vpop.f32.mrf.mxu0
    %v1794 = vadd.f32 0.0, %v1793
    %1795 = vdwg.mxu0
    %v1797 = vsel %vm1665, %v526, 0
    %v1800 = vsel %vm1665, %v1052, 0
    %1802 = vmatpush.xpose.msra.mxu0 0.0
    %1803 = vmatpush.xpose.msra.mxu0 0.0
    %1804 = vmatpush.xpose.msra.mxu0 0.0
    %1805 = vmatpush.xpose.msra.mxu0 0.0
    %1806 = vmatpush.xpose.msra.mxu0 0.0
    %1807 = vmatpush.xpose.msra.mxu0 0.0
    %1808 = vmatpush.xpose.msra.mxu0 0.0
    %1809 = vmatpush.xpose.msra.mxu0 0.0
    %1810 = vmatpush.xpose.msra.mxu0 0.0
    %1811 = vmatpush.xpose.msra.mxu0 0.0
    %1812 = vmatpush.xpose.msra.mxu0 0.0
    %1813 = vmatpush.xpose.msra.mxu0 0.0
    %1814 = vmatpush.xpose.msra.mxu0 0.0
    %1815 = vmatpush.xpose.msra.mxu0 0.0
    %1816 = vmatpush.xpose.msra.mxu0 0.0
    %1817 = vmatpush.xpose.msra.mxu0 %v1800
    %1818 = vmatmul.f32.gmra.mxu0 %v1797
    %v1819 = vpop.f32.mrf.mxu0
    %v1820 = vadd.f32 0.0, %v1819
    %1821 = vdwg.mxu0
    %v1823 = vsel %vm1665, %v528, 0
    %v1826 = vsel %vm1665, %v1054, 0
    %1828 = vmatpush.xpose.msra.mxu0 0.0
    %1829 = vmatpush.xpose.msra.mxu0 0.0
    %1830 = vmatpush.xpose.msra.mxu0 0.0
    %1831 = vmatpush.xpose.msra.mxu0 0.0
    %1832 = vmatpush.xpose.msra.mxu0 0.0
    %1833 = vmatpush.xpose.msra.mxu0 0.0
    %1834 = vmatpush.xpose.msra.mxu0 0.0
    %1835 = vmatpush.xpose.msra.mxu0 0.0
    %1836 = vmatpush.xpose.msra.mxu0 0.0
    %1837 = vmatpush.xpose.msra.mxu0 0.0
    %1838 = vmatpush.xpose.msra.mxu0 0.0
    %1839 = vmatpush.xpose.msra.mxu0 0.0
    %1840 = vmatpush.xpose.msra.mxu0 0.0
    %1841 = vmatpush.xpose.msra.mxu0 0.0
    %1842 = vmatpush.xpose.msra.mxu0 0.0
    %1843 = vmatpush.xpose.msra.mxu0 %v1826
    %1844 = vmatmul.f32.gmra.mxu0 %v1823
    %v1845 = vpop.f32.mrf.mxu0
    %v1846 = vadd.f32 0.0, %v1845
    %1847 = vdwg.mxu0
    %v1849 = vsel %vm1665, %v530, 0
    %v1852 = vsel %vm1665, %v1056, 0
    %1854 = vmatpush.xpose.msra.mxu0 0.0
    %1855 = vmatpush.xpose.msra.mxu0 0.0
    %1856 = vmatpush.xpose.msra.mxu0 0.0
    %1857 = vmatpush.xpose.msra.mxu0 0.0
    %1858 = vmatpush.xpose.msra.mxu0 0.0
    %1859 = vmatpush.xpose.msra.mxu0 0.0
    %1860 = vmatpush.xpose.msra.mxu0 0.0
    %1861 = vmatpush.xpose.msra.mxu0 0.0
    %1862 = vmatpush.xpose.msra.mxu0 0.0
    %1863 = vmatpush.xpose.msra.mxu0 0.0
    %1864 = vmatpush.xpose.msra.mxu0 0.0
    %1865 = vmatpush.xpose.msra.mxu0 0.0
    %1866 = vmatpush.xpose.msra.mxu0 0.0
    %1867 = vmatpush.xpose.msra.mxu0 0.0
    %1868 = vmatpush.xpose.msra.mxu0 0.0
    %1869 = vmatpush.xpose.msra.mxu0 %v1852
    %1870 = vmatmul.f32.gmra.mxu0 %v1849
    %v1871 = vpop.f32.mrf.mxu0
    %v1872 = vadd.f32 0.0, %v1871
    %1873 = vdwg.mxu0
    %v1875 = vsel %vm1665, %v628, 0
    %v1878 = vsel %vm1665, %v1154, 0
    %1880 = vmatpush.xpose.msra.mxu0 0.0
    %1881 = vmatpush.xpose.msra.mxu0 0.0
    %1882 = vmatpush.xpose.msra.mxu0 0.0
    %1883 = vmatpush.xpose.msra.mxu0 0.0
    %1884 = vmatpush.xpose.msra.mxu0 0.0
    %1885 = vmatpush.xpose.msra.mxu0 0.0
    %1886 = vmatpush.xpose.msra.mxu0 0.0
    %1887 = vmatpush.xpose.msra.mxu0 0.0
    %1888 = vmatpush.xpose.msra.mxu0 0.0
    %1889 = vmatpush.xpose.msra.mxu0 0.0
    %1890 = vmatpush.xpose.msra.mxu0 0.0
    %1891 = vmatpush.xpose.msra.mxu0 0.0
    %1892 = vmatpush.xpose.msra.mxu0 0.0
    %1893 = vmatpush.xpose.msra.mxu0 0.0
    %1894 = vmatpush.xpose.msra.mxu0 0.0
    %1895 = vmatpush.xpose.msra.mxu0 %v1878
    %1896 = vmatmul.f32.gmra.mxu0 %v1875
    %v1897 = vpop.f32.mrf.mxu0
    %v1898 = vadd.f32 0.0, %v1897
    %1899 = vdwg.mxu0
    %v1901 = vsel %vm1665, %v630, 0
    %v1904 = vsel %vm1665, %v1156, 0
    %1906 = vmatpush.xpose.msra.mxu0 0.0
    %1907 = vmatpush.xpose.msra.mxu0 0.0
    %1908 = vmatpush.xpose.msra.mxu0 0.0
    %1909 = vmatpush.xpose.msra.mxu0 0.0
    %1910 = vmatpush.xpose.msra.mxu0 0.0
    %1911 = vmatpush.xpose.msra.mxu0 0.0
    %1912 = vmatpush.xpose.msra.mxu0 0.0
    %1913 = vmatpush.xpose.msra.mxu0 0.0
    %1914 = vmatpush.xpose.msra.mxu0 0.0
    %1915 = vmatpush.xpose.msra.mxu0 0.0
    %1916 = vmatpush.xpose.msra.mxu0 0.0
    %1917 = vmatpush.xpose.msra.mxu0 0.0
    %1918 = vmatpush.xpose.msra.mxu0 0.0
    %1919 = vmatpush.xpose.msra.mxu0 0.0
    %1920 = vmatpush.xpose.msra.mxu0 0.0
    %1921 = vmatpush.xpose.msra.mxu0 %v1904
    %1922 = vmatmul.f32.gmra.mxu0 %v1901
    %v1923 = vpop.f32.mrf.mxu0
    %v1924 = vadd.f32 0.0, %v1923
    %1925 = vdwg.mxu0
    %v1927 = vsel %vm1665, %v632, 0
    %v1930 = vsel %vm1665, %v1158, 0
    %1932 = vmatpush.xpose.msra.mxu0 0.0
    %1933 = vmatpush.xpose.msra.mxu0 0.0
    %1934 = vmatpush.xpose.msra.mxu0 0.0
    %1935 = vmatpush.xpose.msra.mxu0 0.0
    %1936 = vmatpush.xpose.msra.mxu0 0.0
    %1937 = vmatpush.xpose.msra.mxu0 0.0
    %1938 = vmatpush.xpose.msra.mxu0 0.0
    %1939 = vmatpush.xpose.msra.mxu0 0.0
    %1940 = vmatpush.xpose.msra.mxu0 0.0
    %1941 = vmatpush.xpose.msra.mxu0 0.0
    %1942 = vmatpush.xpose.msra.mxu0 0.0
    %1943 = vmatpush.xpose.msra.mxu0 0.0
    %1944 = vmatpush.xpose.msra.mxu0 0.0
    %1945 = vmatpush.xpose.msra.mxu0 0.0
    %1946 = vmatpush.xpose.msra.mxu0 0.0
    %1947 = vmatpush.xpose.msra.mxu0 %v1930
    %1948 = vmatmul.f32.gmra.mxu0 %v1927
    %v1949 = vpop.f32.mrf.mxu0
    %v1950 = vadd.f32 0.0, %v1949
    %1951 = vdwg.mxu0
    %v1953 = vsel %vm1665, %v634, 0
    %v1956 = vsel %vm1665, %v1160, 0
    %1958 = vmatpush.xpose.msra.mxu0 0.0
    %1959 = vmatpush.xpose.msra.mxu0 0.0
    %1960 = vmatpush.xpose.msra.mxu0 0.0
    %1961 = vmatpush.xpose.msra.mxu0 0.0
    %1962 = vmatpush.xpose.msra.mxu0 0.0
    %1963 = vmatpush.xpose.msra.mxu0 0.0
    %1964 = vmatpush.xpose.msra.mxu0 0.0
    %1965 = vmatpush.xpose.msra.mxu0 0.0
    %1966 = vmatpush.xpose.msra.mxu0 0.0
    %1967 = vmatpush.xpose.msra.mxu0 0.0
    %1968 = vmatpush.xpose.msra.mxu0 0.0
    %1969 = vmatpush.xpose.msra.mxu0 0.0
    %1970 = vmatpush.xpose.msra.mxu0 0.0
    %1971 = vmatpush.xpose.msra.mxu0 0.0
    %1972 = vmatpush.xpose.msra.mxu0 0.0
    %1973 = vmatpush.xpose.msra.mxu0 %v1956
    %1974 = vmatmul.f32.gmra.mxu0 %v1953
    %v1975 = vpop.f32.mrf.mxu0
    %v1976 = vadd.f32 0.0, %v1975
    %1977 = vdwg.mxu0
    %v1979 = vsel %vm1665, %v636, 0
    %v1982 = vsel %vm1665, %v1162, 0
    %1984 = vmatpush.xpose.msra.mxu0 0.0
    %1985 = vmatpush.xpose.msra.mxu0 0.0
    %1986 = vmatpush.xpose.msra.mxu0 0.0
    %1987 = vmatpush.xpose.msra.mxu0 0.0
    %1988 = vmatpush.xpose.msra.mxu0 0.0
    %1989 = vmatpush.xpose.msra.mxu0 0.0
    %1990 = vmatpush.xpose.msra.mxu0 0.0
    %1991 = vmatpush.xpose.msra.mxu0 0.0
    %1992 = vmatpush.xpose.msra.mxu0 0.0
    %1993 = vmatpush.xpose.msra.mxu0 0.0
    %1994 = vmatpush.xpose.msra.mxu0 0.0
    %1995 = vmatpush.xpose.msra.mxu0 0.0
    %1996 = vmatpush.xpose.msra.mxu0 0.0
    %1997 = vmatpush.xpose.msra.mxu0 0.0
    %1998 = vmatpush.xpose.msra.mxu0 0.0
    %1999 = vmatpush.xpose.msra.mxu0 %v1982
    %2000 = vmatmul.f32.gmra.mxu0 %v1979
    %v2001 = vpop.f32.mrf.mxu0
    %v2002 = vadd.f32 0.0, %v2001
    %2003 = vdwg.mxu0
    %v2005 = vsel %vm1665, %v638, 0
    %v2008 = vsel %vm1665, %v1164, 0
    %2010 = vmatpush.xpose.msra.mxu0 0.0
    %2011 = vmatpush.xpose.msra.mxu0 0.0
    %2012 = vmatpush.xpose.msra.mxu0 0.0
    %2013 = vmatpush.xpose.msra.mxu0 0.0
    %2014 = vmatpush.xpose.msra.mxu0 0.0
    %2015 = vmatpush.xpose.msra.mxu0 0.0
    %2016 = vmatpush.xpose.msra.mxu0 0.0
    %2017 = vmatpush.xpose.msra.mxu0 0.0
    %2018 = vmatpush.xpose.msra.mxu0 0.0
    %2019 = vmatpush.xpose.msra.mxu0 0.0
    %2020 = vmatpush.xpose.msra.mxu0 0.0
    %2021 = vmatpush.xpose.msra.mxu0 0.0
    %2022 = vmatpush.xpose.msra.mxu0 0.0
    %2023 = vmatpush.xpose.msra.mxu0 0.0
    %2024 = vmatpush.xpose.msra.mxu0 0.0
    %2025 = vmatpush.xpose.msra.mxu0 %v2008
    %2026 = vmatmul.f32.gmra.mxu0 %v2005
    %v2027 = vpop.f32.mrf.mxu0
    %v2028 = vadd.f32 0.0, %v2027
    %2029 = vdwg.mxu0
    %v2031 = vsel %vm1665, %v640, 0
    %v2034 = vsel %vm1665, %v1166, 0
    %2036 = vmatpush.xpose.msra.mxu0 0.0
    %2037 = vmatpush.xpose.msra.mxu0 0.0
    %2038 = vmatpush.xpose.msra.mxu0 0.0
    %2039 = vmatpush.xpose.msra.mxu0 0.0
    %2040 = vmatpush.xpose.msra.mxu0 0.0
    %2041 = vmatpush.xpose.msra.mxu0 0.0
    %2042 = vmatpush.xpose.msra.mxu0 0.0
    %2043 = vmatpush.xpose.msra.mxu0 0.0
    %2044 = vmatpush.xpose.msra.mxu0 0.0
    %2045 = vmatpush.xpose.msra.mxu0 0.0
    %2046 = vmatpush.xpose.msra.mxu0 0.0
    %2047 = vmatpush.xpose.msra.mxu0 0.0
    %2048 = vmatpush.xpose.msra.mxu0 0.0
    %2049 = vmatpush.xpose.msra.mxu0 0.0
    %2050 = vmatpush.xpose.msra.mxu0 0.0
    %2051 = vmatpush.xpose.msra.mxu0 %v2034
    %2052 = vmatmul.f32.gmra.mxu0 %v2031
    %v2053 = vpop.f32.mrf.mxu0
    %v2054 = vadd.f32 0.0, %v2053
    %2055 = vdwg.mxu0
    %v2057 = vsel %vm1665, %v642, 0
    %v2060 = vsel %vm1665, %v1168, 0
    %2062 = vmatpush.xpose.msra.mxu0 0.0
    %2063 = vmatpush.xpose.msra.mxu0 0.0
    %2064 = vmatpush.xpose.msra.mxu0 0.0
    %2065 = vmatpush.xpose.msra.mxu0 0.0
    %2066 = vmatpush.xpose.msra.mxu0 0.0
    %2067 = vmatpush.xpose.msra.mxu0 0.0
    %2068 = vmatpush.xpose.msra.mxu0 0.0
    %2069 = vmatpush.xpose.msra.mxu0 0.0
    %2070 = vmatpush.xpose.msra.mxu0 0.0
    %2071 = vmatpush.xpose.msra.mxu0 0.0
    %2072 = vmatpush.xpose.msra.mxu0 0.0
    %2073 = vmatpush.xpose.msra.mxu0 0.0
    %2074 = vmatpush.xpose.msra.mxu0 0.0
    %2075 = vmatpush.xpose.msra.mxu0 0.0
    %2076 = vmatpush.xpose.msra.mxu0 0.0
    %2077 = vmatpush.xpose.msra.mxu0 %v2060
    %2078 = vmatmul.f32.gmra.mxu0 %v2057
    %v2079 = vpop.f32.mrf.mxu0
    %v2080 = vadd.f32 0.0, %v2079
    %2081 = vdwg.mxu0
    %vm2082 = vcmask 64512
    %v2083 = vsel %vm2082, %v1690, -inf
    %2084 = vmax.xlane.f32.xlu0 %v2083
    %v2085 = vpop.xlane.xlu0 %2084
    %v2086 = vsel %vm2082, %v1716, -inf
    %2087 = vmax.xlane.f32.xlu0 %v2086
    %v2088 = vpop.xlane.xlu0 %2087
    %v2089 = vsel %vm2082, %v1742, -inf
    %2090 = vmax.xlane.f32.xlu0 %v2089
    %v2091 = vpop.xlane.xlu0 %2090
    %v2092 = vsel %vm2082, %v1768, -inf
    %2093 = vmax.xlane.f32.xlu0 %v2092
    %v2094 = vpop.xlane.xlu0 %2093
    %v2095 = vsel %vm2082, %v1794, -inf
    %2096 = vmax.xlane.f32.xlu0 %v2095
    %v2097 = vpop.xlane.xlu0 %2096
    %v2098 = vsel %vm2082, %v1820, -inf
    %2099 = vmax.xlane.f32.xlu0 %v2098
    %v2100 = vpop.xlane.xlu0 %2099
    %v2101 = vsel %vm2082, %v1846, -inf
    %2102 = vmax.xlane.f32.xlu0 %v2101
    %v2103 = vpop.xlane.xlu0 %2102
    %v2104 = vsel %vm2082, %v1872, -inf
    %2105 = vmax.xlane.f32.xlu0 %v2104
    %v2106 = vpop.xlane.xlu0 %2105
    %v2107 = vsel %vm2082, %v1898, -inf
    %2108 = vmax.xlane.f32.xlu0 %v2107
    %v2109 = vpop.xlane.xlu0 %2108
    %v2110 = vsel %vm2082, %v1924, -inf
    %2111 = vmax.xlane.f32.xlu0 %v2110
    %v2112 = vpop.xlane.xlu0 %2111
    %v2113 = vsel %vm2082, %v1950, -inf
    %2114 = vmax.xlane.f32.xlu0 %v2113
    %v2115 = vpop.xlane.xlu0 %2114
    %v2116 = vsel %vm2082, %v1976, -inf
    %2117 = vmax.xlane.f32.xlu0 %v2116
    %v2118 = vpop.xlane.xlu0 %2117
    %v2119 = vsel %vm2082, %v2002, -inf
    %2120 = vmax.xlane.f32.xlu0 %v2119
    %v2121 = vpop.xlane.xlu0 %2120
    %v2122 = vsel %vm2082, %v2028, -inf
    %2123 = vmax.xlane.f32.xlu0 %v2122
    %v2124 = vpop.xlane.xlu0 %2123
    %v2125 = vsel %vm2082, %v2054, -inf
    %2126 = vmax.xlane.f32.xlu0 %v2125
    %v2127 = vpop.xlane.xlu0 %2126
    %v2128 = vsel %vm2082, %v2080, -inf
    %2129 = vmax.xlane.f32.xlu0 %v2128
    %v2130 = vpop.xlane.xlu0 %2129
    %v2131 = vsub.f32 %v1690, %v2085
    %v2132 = vsub.f32 %v1716, %v2088
    %v2133 = vsub.f32 %v1742, %v2091
    %v2134 = vsub.f32 %v1768, %v2094
    %v2135 = vsub.f32 %v1794, %v2097
    %v2136 = vsub.f32 %v1820, %v2100
    %v2137 = vsub.f32 %v1846, %v2103
    %v2138 = vsub.f32 %v1872, %v2106
    %v2139 = vsub.f32 %v1898, %v2109
    %v2140 = vsub.f32 %v1924, %v2112
    %v2141 = vsub.f32 %v1950, %v2115
    %v2142 = vsub.f32 %v1976, %v2118
    %v2143 = vsub.f32 %v2002, %v2121
    %v2144 = vsub.f32 %v2028, %v2124
    %v2145 = vsub.f32 %v2054, %v2127
    %v2146 = vsub.f32 %v2080, %v2130
    %v2147 = vmul.f32 %v2131, 1.442695
    %v2148 = vpow.pop %v2147
    %v2149 = vmul.f32 %v2132, 1.442695
    %v2150 = vpow.pop %v2149
    %v2151 = vmul.f32 %v2133, 1.442695
    %v2152 = vpow.pop %v2151
    %v2153 = vmul.f32 %v2134, 1.442695
    %v2154 = vpow.pop %v2153
    %v2155 = vmul.f32 %v2135, 1.442695
    %v2156 = vpow.pop %v2155
    %v2157 = vmul.f32 %v2136, 1.442695
    %v2158 = vpow.pop %v2157
    %v2159 = vmul.f32 %v2137, 1.442695
    %v2160 = vpow.pop %v2159
    %v2161 = vmul.f32 %v2138, 1.442695
    %v2162 = vpow.pop %v2161
    %v2163 = vmul.f32 %v2139, 1.442695
    %v2164 = vpow.pop %v2163
    %v2165 = vmul.f32 %v2140, 1.442695
    %v2166 = vpow.pop %v2165
    %v2167 = vmul.f32 %v2141, 1.442695
    %v2168 = vpow.pop %v2167
    %v2169 = vmul.f32 %v2142, 1.442695
    %v2170 = vpow.pop %v2169
    %v2171 = vmul.f32 %v2143, 1.442695
    %v2172 = vpow.pop %v2171
    %v2173 = vmul.f32 %v2144, 1.442695
    %v2174 = vpow.pop %v2173
    %v2175 = vmul.f32 %v2145, 1.442695
    %v2176 = vpow.pop %v2175
    %v2177 = vmul.f32 %v2146, 1.442695
    %v2178 = vpow.pop %v2177
    %v2179 = vsel %vm2082, %v2148, 0.0
    %2180 = vadd.xlane.f32.xlu0 %v2179
    %v2181 = vpop.xlane.xlu0 %2180
    %v2182 = vsel %vm2082, %v2150, 0.0
    %2183 = vadd.xlane.f32.xlu0 %v2182
    %v2184 = vpop.xlane.xlu0 %2183
    %v2185 = vsel %vm2082, %v2152, 0.0
    %2186 = vadd.xlane.f32.xlu0 %v2185
    %v2187 = vpop.xlane.xlu0 %2186
    %v2188 = vsel %vm2082, %v2154, 0.0
    %2189 = vadd.xlane.f32.xlu0 %v2188
    %v2190 = vpop.xlane.xlu0 %2189
    %v2191 = vsel %vm2082, %v2156, 0.0
    %2192 = vadd.xlane.f32.xlu0 %v2191
    %v2193 = vpop.xlane.xlu0 %2192
    %v2194 = vsel %vm2082, %v2158, 0.0
    %2195 = vadd.xlane.f32.xlu0 %v2194
    %v2196 = vpop.xlane.xlu0 %2195
    %v2197 = vsel %vm2082, %v2160, 0.0
    %2198 = vadd.xlane.f32.xlu0 %v2197
    %v2199 = vpop.xlane.xlu0 %2198
    %v2200 = vsel %vm2082, %v2162, 0.0
    %2201 = vadd.xlane.f32.xlu0 %v2200
    %v2202 = vpop.xlane.xlu0 %2201
    %v2203 = vsel %vm2082, %v2164, 0.0
    %2204 = vadd.xlane.f32.xlu0 %v2203
    %v2205 = vpop.xlane.xlu0 %2204
    %v2206 = vsel %vm2082, %v2166, 0.0
    %2207 = vadd.xlane.f32.xlu0 %v2206
    %v2208 = vpop.xlane.xlu0 %2207
    %v2209 = vsel %vm2082, %v2168, 0.0
    %2210 = vadd.xlane.f32.xlu0 %v2209
    %v2211 = vpop.xlane.xlu0 %2210
    %v2212 = vsel %vm2082, %v2170, 0.0
    %2213 = vadd.xlane.f32.xlu0 %v2212
    %v2214 = vpop.xlane.xlu0 %2213
    %v2215 = vsel %vm2082, %v2172, 0.0
    %2216 = vadd.xlane.f32.xlu0 %v2215
    %v2217 = vpop.xlane.xlu0 %2216
    %v2218 = vsel %vm2082, %v2174, 0.0
    %2219 = vadd.xlane.f32.xlu0 %v2218
    %v2220 = vpop.xlane.xlu0 %2219
    %v2221 = vsel %vm2082, %v2176, 0.0
    %2222 = vadd.xlane.f32.xlu0 %v2221
    %v2223 = vpop.xlane.xlu0 %2222
    %v2224 = vsel %vm2082, %v2178, 0.0
    %2225 = vadd.xlane.f32.xlu0 %v2224
    %v2226 = vpop.xlane.xlu0 %2225
    %v2227 = vrcp.pop %v2181
    %v2228 = vrcp.pop %v2184
    %v2229 = vrcp.pop %v2187
    %v2230 = vrcp.pop %v2190
    %v2231 = vrcp.pop %v2193
    %v2232 = vrcp.pop %v2196
    %v2233 = vrcp.pop %v2199
    %v2234 = vrcp.pop %v2202
    %v2235 = vrcp.pop %v2205
    %v2236 = vrcp.pop %v2208
    %v2237 = vrcp.pop %v2211
    %v2238 = vrcp.pop %v2214
    %v2239 = vrcp.pop %v2217
    %v2240 = vrcp.pop %v2220
    %v2241 = vrcp.pop %v2223
    %v2242 = vrcp.pop %v2226
    %v2243 = vmul.f32 %v2148, %v2227
    %v2244 = vmul.f32 %v2150, %v2228
    %v2245 = vmul.f32 %v2152, %v2229
    %v2246 = vmul.f32 %v2154, %v2230
    %v2247 = vmul.f32 %v2156, %v2231
    %v2248 = vmul.f32 %v2158, %v2232
    %v2249 = vmul.f32 %v2160, %v2233
    %v2250 = vmul.f32 %v2162, %v2234
    %v2251 = vmul.f32 %v2164, %v2235
    %v2252 = vmul.f32 %v2166, %v2236
    %v2253 = vmul.f32 %v2168, %v2237
    %v2254 = vmul.f32 %v2170, %v2238
    %v2255 = vmul.f32 %v2172, %v2239
    %v2256 = vmul.f32 %v2174, %v2240
    %v2257 = vmul.f32 %v2176, %v2241
    %v2258 = vmul.f32 %v2178, %v2242
    %v2260 = vsel %vm2082, %v2243, 0
    %2262 = vmatpush.msra.mxu0 0.0
    %2263 = vmatpush.msra.mxu0 0.0
    %2264 = vmatpush.msra.mxu0 0.0
    %2265 = vmatpush.msra.mxu0 0.0
    %2266 = vmatpush.msra.mxu0 0.0
    %2267 = vmatpush.msra.mxu0 0.0
    %2268 = vmatpush.msra.mxu0 0.0
    %2269 = vmatpush.msra.mxu0 0.0
    %2270 = vmatpush.msra.mxu0 0.0
    %2271 = vmatpush.msra.mxu0 0.0
    %2272 = vmatpush.msra.mxu0 0.0
    %2273 = vmatpush.msra.mxu0 0.0
    %2274 = vmatpush.msra.mxu0 0.0
    %2275 = vmatpush.msra.mxu0 0.0
    %2276 = vmatpush.msra.mxu0 0.0
    %2277 = vmatpush.msra.mxu0 %v1538
    %2278 = vmatmul.f32.gmra.mxu0 %v2260
    %v2279 = vpop.f32.mrf.mxu0
    %v2280 = vadd.f32 0.0, %v2279
    %2281 = vdwg.mxu0
    %v2283 = vsel %vm2082, %v2244, 0
    %2285 = vmatpush.msra.mxu0 0.0
    %2286 = vmatpush.msra.mxu0 0.0
    %2287 = vmatpush.msra.mxu0 0.0
    %2288 = vmatpush.msra.mxu0 0.0
    %2289 = vmatpush.msra.mxu0 0.0
    %2290 = vmatpush.msra.mxu0 0.0
    %2291 = vmatpush.msra.mxu0 0.0
    %2292 = vmatpush.msra.mxu0 0.0
    %2293 = vmatpush.msra.mxu0 0.0
    %2294 = vmatpush.msra.mxu0 0.0
    %2295 = vmatpush.msra.mxu0 0.0
    %2296 = vmatpush.msra.mxu0 0.0
    %2297 = vmatpush.msra.mxu0 0.0
    %2298 = vmatpush.msra.mxu0 0.0
    %2299 = vmatpush.msra.mxu0 0.0
    %2300 = vmatpush.msra.mxu0 %v1540
    %2301 = vmatmul.f32.gmra.mxu0 %v2283
    %v2302 = vpop.f32.mrf.mxu0
    %v2303 = vadd.f32 0.0, %v2302
    %2304 = vdwg.mxu0
    %v2306 = vsel %vm2082, %v2245, 0
    %2308 = vmatpush.msra.mxu0 0.0
    %2309 = vmatpush.msra.mxu0 0.0
    %2310 = vmatpush.msra.mxu0 0.0
    %2311 = vmatpush.msra.mxu0 0.0
    %2312 = vmatpush.msra.mxu0 0.0
    %2313 = vmatpush.msra.mxu0 0.0
    %2314 = vmatpush.msra.mxu0 0.0
    %2315 = vmatpush.msra.mxu0 0.0
    %2316 = vmatpush.msra.mxu0 0.0
    %2317 = vmatpush.msra.mxu0 0.0
    %2318 = vmatpush.msra.mxu0 0.0
    %2319 = vmatpush.msra.mxu0 0.0
    %2320 = vmatpush.msra.mxu0 0.0
    %2321 = vmatpush.msra.mxu0 0.0
    %2322 = vmatpush.msra.mxu0 0.0
    %2323 = vmatpush.msra.mxu0 %v1542
    %2324 = vmatmul.f32.gmra.mxu0 %v2306
    %v2325 = vpop.f32.mrf.mxu0
    %v2326 = vadd.f32 0.0, %v2325
    %2327 = vdwg.mxu0
    %v2329 = vsel %vm2082, %v2246, 0
    %2331 = vmatpush.msra.mxu0 0.0
    %2332 = vmatpush.msra.mxu0 0.0
    %2333 = vmatpush.msra.mxu0 0.0
    %2334 = vmatpush.msra.mxu0 0.0
    %2335 = vmatpush.msra.mxu0 0.0
    %2336 = vmatpush.msra.mxu0 0.0
    %2337 = vmatpush.msra.mxu0 0.0
    %2338 = vmatpush.msra.mxu0 0.0
    %2339 = vmatpush.msra.mxu0 0.0
    %2340 = vmatpush.msra.mxu0 0.0
    %2341 = vmatpush.msra.mxu0 0.0
    %2342 = vmatpush.msra.mxu0 0.0
    %2343 = vmatpush.msra.mxu0 0.0
    %2344 = vmatpush.msra.mxu0 0.0
    %2345 = vmatpush.msra.mxu0 0.0
    %2346 = vmatpush.msra.mxu0 %v1544
    %2347 = vmatmul.f32.gmra.mxu0 %v2329
    %v2348 = vpop.f32.mrf.mxu0
    %v2349 = vadd.f32 0.0, %v2348
    %2350 = vdwg.mxu0
    %v2352 = vsel %vm2082, %v2247, 0
    %2354 = vmatpush.msra.mxu0 0.0
    %2355 = vmatpush.msra.mxu0 0.0
    %2356 = vmatpush.msra.mxu0 0.0
    %2357 = vmatpush.msra.mxu0 0.0
    %2358 = vmatpush.msra.mxu0 0.0
    %2359 = vmatpush.msra.mxu0 0.0
    %2360 = vmatpush.msra.mxu0 0.0
    %2361 = vmatpush.msra.mxu0 0.0
    %2362 = vmatpush.msra.mxu0 0.0
    %2363 = vmatpush.msra.mxu0 0.0
    %2364 = vmatpush.msra.mxu0 0.0
    %2365 = vmatpush.msra.mxu0 0.0
    %2366 = vmatpush.msra.mxu0 0.0
    %2367 = vmatpush.msra.mxu0 0.0
    %2368 = vmatpush.msra.mxu0 0.0
    %2369 = vmatpush.msra.mxu0 %v1546
    %2370 = vmatmul.f32.gmra.mxu0 %v2352
    %v2371 = vpop.f32.mrf.mxu0
    %v2372 = vadd.f32 0.0, %v2371
    %2373 = vdwg.mxu0
    %v2375 = vsel %vm2082, %v2248, 0
    %2377 = vmatpush.msra.mxu0 0.0
    %2378 = vmatpush.msra.mxu0 0.0
    %2379 = vmatpush.msra.mxu0 0.0
    %2380 = vmatpush.msra.mxu0 0.0
    %2381 = vmatpush.msra.mxu0 0.0
    %2382 = vmatpush.msra.mxu0 0.0
    %2383 = vmatpush.msra.mxu0 0.0
    %2384 = vmatpush.msra.mxu0 0.0
    %2385 = vmatpush.msra.mxu0 0.0
    %2386 = vmatpush.msra.mxu0 0.0
    %2387 = vmatpush.msra.mxu0 0.0
    %2388 = vmatpush.msra.mxu0 0.0
    %2389 = vmatpush.msra.mxu0 0.0
    %2390 = vmatpush.msra.mxu0 0.0
    %2391 = vmatpush.msra.mxu0 0.0
    %2392 = vmatpush.msra.mxu0 %v1548
    %2393 = vmatmul.f32.gmra.mxu0 %v2375
    %v2394 = vpop.f32.mrf.mxu0
    %v2395 = vadd.f32 0.0, %v2394
    %2396 = vdwg.mxu0
    %v2398 = vsel %vm2082, %v2249, 0
    %2400 = vmatpush.msra.mxu0 0.0
    %2401 = vmatpush.msra.mxu0 0.0
    %2402 = vmatpush.msra.mxu0 0.0
    %2403 = vmatpush.msra.mxu0 0.0
    %2404 = vmatpush.msra.mxu0 0.0
    %2405 = vmatpush.msra.mxu0 0.0
    %2406 = vmatpush.msra.mxu0 0.0
    %2407 = vmatpush.msra.mxu0 0.0
    %2408 = vmatpush.msra.mxu0 0.0
    %2409 = vmatpush.msra.mxu0 0.0
    %2410 = vmatpush.msra.mxu0 0.0
    %2411 = vmatpush.msra.mxu0 0.0
    %2412 = vmatpush.msra.mxu0 0.0
    %2413 = vmatpush.msra.mxu0 0.0
    %2414 = vmatpush.msra.mxu0 0.0
    %2415 = vmatpush.msra.mxu0 %v1550
    %2416 = vmatmul.f32.gmra.mxu0 %v2398
    %v2417 = vpop.f32.mrf.mxu0
    %v2418 = vadd.f32 0.0, %v2417
    %2419 = vdwg.mxu0
    %v2421 = vsel %vm2082, %v2250, 0
    %2423 = vmatpush.msra.mxu0 0.0
    %2424 = vmatpush.msra.mxu0 0.0
    %2425 = vmatpush.msra.mxu0 0.0
    %2426 = vmatpush.msra.mxu0 0.0
    %2427 = vmatpush.msra.mxu0 0.0
    %2428 = vmatpush.msra.mxu0 0.0
    %2429 = vmatpush.msra.mxu0 0.0
    %2430 = vmatpush.msra.mxu0 0.0
    %2431 = vmatpush.msra.mxu0 0.0
    %2432 = vmatpush.msra.mxu0 0.0
    %2433 = vmatpush.msra.mxu0 0.0
    %2434 = vmatpush.msra.mxu0 0.0
    %2435 = vmatpush.msra.mxu0 0.0
    %2436 = vmatpush.msra.mxu0 0.0
    %2437 = vmatpush.msra.mxu0 0.0
    %2438 = vmatpush.msra.mxu0 %v1552
    %2439 = vmatmul.f32.gmra.mxu0 %v2421
    %v2440 = vpop.f32.mrf.mxu0
    %v2441 = vadd.f32 0.0, %v2440
    %2442 = vdwg.mxu0
    %v2444 = vsel %vm2082, %v2251, 0
    %2446 = vmatpush.msra.mxu0 0.0
    %2447 = vmatpush.msra.mxu0 0.0
    %2448 = vmatpush.msra.mxu0 0.0
    %2449 = vmatpush.msra.mxu0 0.0
    %2450 = vmatpush.msra.mxu0 0.0
    %2451 = vmatpush.msra.mxu0 0.0
    %2452 = vmatpush.msra.mxu0 0.0
    %2453 = vmatpush.msra.mxu0 0.0
    %2454 = vmatpush.msra.mxu0 0.0
    %2455 = vmatpush.msra.mxu0 0.0
    %2456 = vmatpush.msra.mxu0 0.0
    %2457 = vmatpush.msra.mxu0 0.0
    %2458 = vmatpush.msra.mxu0 0.0
    %2459 = vmatpush.msra.mxu0 0.0
    %2460 = vmatpush.msra.mxu0 0.0
    %2461 = vmatpush.msra.mxu0 %v1650
    %2462 = vmatmul.f32.gmra.mxu0 %v2444
    %v2463 = vpop.f32.mrf.mxu0
    %v2464 = vadd.f32 0.0, %v2463
    %2465 = vdwg.mxu0
    %v2467 = vsel %vm2082, %v2252, 0
    %2469 = vmatpush.msra.mxu0 0.0
    %2470 = vmatpush.msra.mxu0 0.0
    %2471 = vmatpush.msra.mxu0 0.0
    %2472 = vmatpush.msra.mxu0 0.0
    %2473 = vmatpush.msra.mxu0 0.0
    %2474 = vmatpush.msra.mxu0 0.0
    %2475 = vmatpush.msra.mxu0 0.0
    %2476 = vmatpush.msra.mxu0 0.0
    %2477 = vmatpush.msra.mxu0 0.0
    %2478 = vmatpush.msra.mxu0 0.0
    %2479 = vmatpush.msra.mxu0 0.0
    %2480 = vmatpush.msra.mxu0 0.0
    %2481 = vmatpush.msra.mxu0 0.0
    %2482 = vmatpush.msra.mxu0 0.0
    %2483 = vmatpush.msra.mxu0 0.0
    %2484 = vmatpush.msra.mxu0 %v1652
    %2485 = vmatmul.f32.gmra.mxu0 %v2467
    %v2486 = vpop.f32.mrf.mxu0
    %v2487 = vadd.f32 0.0, %v2486
    %2488 = vdwg.mxu0
    %v2490 = vsel %vm2082, %v2253, 0
    %2492 = vmatpush.msra.mxu0 0.0
    %2493 = vmatpush.msra.mxu0 0.0
    %2494 = vmatpush.msra.mxu0 0.0
    %2495 = vmatpush.msra.mxu0 0.0
    %2496 = vmatpush.msra.mxu0 0.0
    %2497 = vmatpush.msra.mxu0 0.0
    %2498 = vmatpush.msra.mxu0 0.0
    %2499 = vmatpush.msra.mxu0 0.0
    %2500 = vmatpush.msra.mxu0 0.0
    %2501 = vmatpush.msra.mxu0 0.0
    %2502 = vmatpush.msra.mxu0 0.0
    %2503 = vmatpush.msra.mxu0 0.0
    %2504 = vmatpush.msra.mxu0 0.0
    %2505 = vmatpush.msra.mxu0 0.0
    %2506 = vmatpush.msra.mxu0 0.0
    %2507 = vmatpush.msra.mxu0 %v1654
    %2508 = vmatmul.f32.gmra.mxu0 %v2490
    %v2509 = vpop.f32.mrf.mxu0
    %v2510 = vadd.f32 0.0, %v2509
    %2511 = vdwg.mxu0
    %v2513 = vsel %vm2082, %v2254, 0
    %2515 = vmatpush.msra.mxu0 0.0
    %2516 = vmatpush.msra.mxu0 0.0
    %2517 = vmatpush.msra.mxu0 0.0
    %2518 = vmatpush.msra.mxu0 0.0
    %2519 = vmatpush.msra.mxu0 0.0
    %2520 = vmatpush.msra.mxu0 0.0
    %2521 = vmatpush.msra.mxu0 0.0
    %2522 = vmatpush.msra.mxu0 0.0
    %2523 = vmatpush.msra.mxu0 0.0
    %2524 = vmatpush.msra.mxu0 0.0
    %2525 = vmatpush.msra.mxu0 0.0
    %2526 = vmatpush.msra.mxu0 0.0
    %2527 = vmatpush.msra.mxu0 0.0
    %2528 = vmatpush.msra.mxu0 0.0
    %2529 = vmatpush.msra.mxu0 0.0
    %2530 = vmatpush.msra.mxu0 %v1656
    %2531 = vmatmul.f32.gmra.mxu0 %v2513
    %v2532 = vpop.f32.mrf.mxu0
    %v2533 = vadd.f32 0.0, %v2532
    %2534 = vdwg.mxu0
    %v2536 = vsel %vm2082, %v2255, 0
    %2538 = vmatpush.msra.mxu0 0.0
    %2539 = vmatpush.msra.mxu0 0.0
    %2540 = vmatpush.msra.mxu0 0.0
    %2541 = vmatpush.msra.mxu0 0.0
    %2542 = vmatpush.msra.mxu0 0.0
    %2543 = vmatpush.msra.mxu0 0.0
    %2544 = vmatpush.msra.mxu0 0.0
    %2545 = vmatpush.msra.mxu0 0.0
    %2546 = vmatpush.msra.mxu0 0.0
    %2547 = vmatpush.msra.mxu0 0.0
    %2548 = vmatpush.msra.mxu0 0.0
    %2549 = vmatpush.msra.mxu0 0.0
    %2550 = vmatpush.msra.mxu0 0.0
    %2551 = vmatpush.msra.mxu0 0.0
    %2552 = vmatpush.msra.mxu0 0.0
    %2553 = vmatpush.msra.mxu0 %v1658
    %2554 = vmatmul.f32.gmra.mxu0 %v2536
    %v2555 = vpop.f32.mrf.mxu0
    %v2556 = vadd.f32 0.0, %v2555
    %2557 = vdwg.mxu0
    %v2559 = vsel %vm2082, %v2256, 0
    %2561 = vmatpush.msra.mxu0 0.0
    %2562 = vmatpush.msra.mxu0 0.0
    %2563 = vmatpush.msra.mxu0 0.0
    %2564 = vmatpush.msra.mxu0 0.0
    %2565 = vmatpush.msra.mxu0 0.0
    %2566 = vmatpush.msra.mxu0 0.0
    %2567 = vmatpush.msra.mxu0 0.0
    %2568 = vmatpush.msra.mxu0 0.0
    %2569 = vmatpush.msra.mxu0 0.0
    %2570 = vmatpush.msra.mxu0 0.0
    %2571 = vmatpush.msra.mxu0 0.0
    %2572 = vmatpush.msra.mxu0 0.0
    %2573 = vmatpush.msra.mxu0 0.0
    %2574 = vmatpush.msra.mxu0 0.0
    %2575 = vmatpush.msra.mxu0 0.0
    %2576 = vmatpush.msra.mxu0 %v1660
    %2577 = vmatmul.f32.gmra.mxu0 %v2559
    %v2578 = vpop.f32.mrf.mxu0
    %v2579 = vadd.f32 0.0, %v2578
    %2580 = vdwg.mxu0
    %v2582 = vsel %vm2082, %v2257, 0
    %2584 = vmatpush.msra.mxu0 0.0
    %2585 = vmatpush.msra.mxu0 0.0
    %2586 = vmatpush.msra.mxu0 0.0
    %2587 = vmatpush.msra.mxu0 0.0
    %2588 = vmatpush.msra.mxu0 0.0
    %2589 = vmatpush.msra.mxu0 0.0
    %2590 = vmatpush.msra.mxu0 0.0
    %2591 = vmatpush.msra.mxu0 0.0
    %2592 = vmatpush.msra.mxu0 0.0
    %2593 = vmatpush.msra.mxu0 0.0
    %2594 = vmatpush.msra.mxu0 0.0
    %2595 = vmatpush.msra.mxu0 0.0
    %2596 = vmatpush.msra.mxu0 0.0
    %2597 = vmatpush.msra.mxu0 0.0
    %2598 = vmatpush.msra.mxu0 0.0
    %2599 = vmatpush.msra.mxu0 %v1662
    %2600 = vmatmul.f32.gmra.mxu0 %v2582
    %v2601 = vpop.f32.mrf.mxu0
    %v2602 = vadd.f32 0.0, %v2601
    %2603 = vdwg.mxu0
    %v2605 = vsel %vm2082, %v2258, 0
    %2607 = vmatpush.msra.mxu0 0.0
    %2608 = vmatpush.msra.mxu0 0.0
    %2609 = vmatpush.msra.mxu0 0.0
    %2610 = vmatpush.msra.mxu0 0.0
    %2611 = vmatpush.msra.mxu0 0.0
    %2612 = vmatpush.msra.mxu0 0.0
    %2613 = vmatpush.msra.mxu0 0.0
    %2614 = vmatpush.msra.mxu0 0.0
    %2615 = vmatpush.msra.mxu0 0.0
    %2616 = vmatpush.msra.mxu0 0.0
    %2617 = vmatpush.msra.mxu0 0.0
    %2618 = vmatpush.msra.mxu0 0.0
    %2619 = vmatpush.msra.mxu0 0.0
    %2620 = vmatpush.msra.mxu0 0.0
    %2621 = vmatpush.msra.mxu0 0.0
    %2622 = vmatpush.msra.mxu0 %v1664
    %2623 = vmatmul.f32.gmra.mxu0 %v2605
    %v2624 = vpop.f32.mrf.mxu0
    %v2625 = vadd.f32 0.0, %v2624
    %2626 = vdwg.mxu0
    %v2627 = vrot.slane %v2326, 4
    %v2628 = vsel %vm195, %v2627, %v2280
    %v2629 = vrot.slane %v2280, 4
    %v2630 = vsel %vm195, %v2326, %v2629
    %v2632 = vunpack.c.l.s4 1983009808
    %v2633 = vunpack.c.0.s8 %v2632
    %v2634 = vperm.slane %v2628, %v2633
    %v2636 = vunpack.c.l.s4 1983009808
    %v2637 = vunpack.c.0.s8 %v2636
    %v2638 = vperm.slane %v2630, %v2637
    %v2639 = vrot.slane %v2349, 4
    %v2640 = vsel %vm195, %v2639, %v2303
    %v2641 = vrot.slane %v2303, 4
    %v2642 = vsel %vm195, %v2349, %v2641
    %v2644 = vunpack.c.l.s4 1983009808
    %v2645 = vunpack.c.0.s8 %v2644
    %v2646 = vperm.slane %v2640, %v2645
    %v2648 = vunpack.c.l.s4 1983009808
    %v2649 = vunpack.c.0.s8 %v2648
    %v2650 = vperm.slane %v2642, %v2649
    %v2651 = vrot.slane %v2418, 4
    %v2652 = vsel %vm195, %v2651, %v2372
    %v2653 = vrot.slane %v2372, 4
    %v2654 = vsel %vm195, %v2418, %v2653
    %v2656 = vunpack.c.l.s4 1983009808
    %v2657 = vunpack.c.0.s8 %v2656
    %v2658 = vperm.slane %v2652, %v2657
    %v2660 = vunpack.c.l.s4 1983009808
    %v2661 = vunpack.c.0.s8 %v2660
    %v2662 = vperm.slane %v2654, %v2661
    %v2663 = vrot.slane %v2441, 4
    %v2664 = vsel %vm195, %v2663, %v2395
    %v2665 = vrot.slane %v2395, 4
    %v2666 = vsel %vm195, %v2441, %v2665
    %v2668 = vunpack.c.l.s4 1983009808
    %v2669 = vunpack.c.0.s8 %v2668
    %v2670 = vperm.slane %v2664, %v2669
    %v2672 = vunpack.c.l.s4 1983009808
    %v2673 = vunpack.c.0.s8 %v2672
    %v2674 = vperm.slane %v2666, %v2673
    %v2675 = vrot.slane %v2646, 4
    %v2676 = vsel %vm195, %v2675, %v2634
    %v2677 = vrot.slane %v2634, 4
    %v2678 = vsel %vm195, %v2646, %v2677
    %v2680 = vunpack.c.l.s4 1934713408
    %v2681 = vunpack.c.0.s8 %v2680
    %v2682 = vperm.slane %v2676, %v2681
    %v2684 = vunpack.c.l.s4 1934713408
    %v2685 = vunpack.c.0.s8 %v2684
    %v2686 = vperm.slane %v2678, %v2685
    %v2687 = vrot.slane %v2650, 4
    %v2688 = vsel %vm195, %v2687, %v2638
    %v2689 = vrot.slane %v2638, 4
    %v2690 = vsel %vm195, %v2650, %v2689
    %v2692 = vunpack.c.l.s4 1934713408
    %v2693 = vunpack.c.0.s8 %v2692
    %v2694 = vperm.slane %v2688, %v2693
    %v2696 = vunpack.c.l.s4 1934713408
    %v2697 = vunpack.c.0.s8 %v2696
    %v2698 = vperm.slane %v2690, %v2697
    %v2699 = vrot.slane %v2670, 4
    %v2700 = vsel %vm195, %v2699, %v2658
    %v2701 = vrot.slane %v2658, 4
    %v2702 = vsel %vm195, %v2670, %v2701
    %v2704 = vunpack.c.l.s4 1934713408
    %v2705 = vunpack.c.0.s8 %v2704
    %v2706 = vperm.slane %v2700, %v2705
    %v2708 = vunpack.c.l.s4 1934713408
    %v2709 = vunpack.c.0.s8 %v2708
    %v2710 = vperm.slane %v2702, %v2709
    %v2711 = vrot.slane %v2674, 4
    %v2712 = vsel %vm195, %v2711, %v2662
    %v2713 = vrot.slane %v2662, 4
    %v2714 = vsel %vm195, %v2674, %v2713
    %v2716 = vunpack.c.l.s4 1934713408
    %v2717 = vunpack.c.0.s8 %v2716
    %v2718 = vperm.slane %v2712, %v2717
    %v2720 = vunpack.c.l.s4 1934713408
    %v2721 = vunpack.c.0.s8 %v2720
    %v2722 = vperm.slane %v2714, %v2721
    %v2723 = vrot.slane %v2706, 4
    %v2724 = vsel %vm195, %v2723, %v2682
    %v2725 = vrot.slane %v2682, 4
    %v2726 = vsel %vm195, %v2706, %v2725
    %v2727 = vrot.slane %v2710, 4
    %v2728 = vsel %vm195, %v2727, %v2686
    %v2729 = vrot.slane %v2686, 4
    %v2730 = vsel %vm195, %v2710, %v2729
    %v2731 = vrot.slane %v2718, 4
    %v2732 = vsel %vm195, %v2731, %v2694
    %v2733 = vrot.slane %v2694, 4
    %v2734 = vsel %vm195, %v2718, %v2733
    %v2735 = vrot.slane %v2722, 4
    %v2736 = vsel %vm195, %v2735, %v2698
    %v2737 = vrot.slane %v2698, 4
    %v2738 = vsel %vm195, %v2722, %v2737
    %v2739 = vrot.slane %v2510, 4
    %v2740 = vsel %vm195, %v2739, %v2464
    %v2741 = vrot.slane %v2464, 4
    %v2742 = vsel %vm195, %v2510, %v2741
    %v2744 = vunpack.c.l.s4 1983009808
    %v2745 = vunpack.c.0.s8 %v2744
    %v2746 = vperm.slane %v2740, %v2745
    %v2748 = vunpack.c.l.s4 1983009808
    %v2749 = vunpack.c.0.s8 %v2748
    %v2750 = vperm.slane %v2742, %v2749
    %v2751 = vrot.slane %v2533, 4
    %v2752 = vsel %vm195, %v2751, %v2487
    %v2753 = vrot.slane %v2487, 4
    %v2754 = vsel %vm195, %v2533, %v2753
    %v2756 = vunpack.c.l.s4 1983009808
    %v2757 = vunpack.c.0.s8 %v2756
    %v2758 = vperm.slane %v2752, %v2757
    %v2760 = vunpack.c.l.s4 1983009808
    %v2761 = vunpack.c.0.s8 %v2760
    %v2762 = vperm.slane %v2754, %v2761
    %v2763 = vrot.slane %v2602, 4
    %v2764 = vsel %vm195, %v2763, %v2556
    %v2765 = vrot.slane %v2556, 4
    %v2766 = vsel %vm195, %v2602, %v2765
    %v2768 = vunpack.c.l.s4 1983009808
    %v2769 = vunpack.c.0.s8 %v2768
    %v2770 = vperm.slane %v2764, %v2769
    %v2772 = vunpack.c.l.s4 1983009808
    %v2773 = vunpack.c.0.s8 %v2772
    %v2774 = vperm.slane %v2766, %v2773
    %v2775 = vrot.slane %v2625, 4
    %v2776 = vsel %vm195, %v2775, %v2579
    %v2777 = vrot.slane %v2579, 4
    %v2778 = vsel %vm195, %v2625, %v2777
    %v2780 = vunpack.c.l.s4 1983009808
    %v2781 = vunpack.c.0.s8 %v2780
    %v2782 = vperm.slane %v2776, %v2781
    %v2784 = vunpack.c.l.s4 1983009808
    %v2785 = vunpack.c.0.s8 %v2784
    %v2786 = vperm.slane %v2778, %v2785
    %v2787 = vrot.slane %v2758, 4
    %v2788 = vsel %vm195, %v2787, %v2746
    %v2789 = vrot.slane %v2746, 4
    %v2790 = vsel %vm195, %v2758, %v2789
    %v2792 = vunpack.c.l.s4 1934713408
    %v2793 = vunpack.c.0.s8 %v2792
    %v2794 = vperm.slane %v2788, %v2793
    %v2796 = vunpack.c.l.s4 1934713408
    %v2797 = vunpack.c.0.s8 %v2796
    %v2798 = vperm.slane %v2790, %v2797
    %v2799 = vrot.slane %v2762, 4
    %v2800 = vsel %vm195, %v2799, %v2750
    %v2801 = vrot.slane %v2750, 4
    %v2802 = vsel %vm195, %v2762, %v2801
    %v2804 = vunpack.c.l.s4 1934713408
    %v2805 = vunpack.c.0.s8 %v2804
    %v2806 = vperm.slane %v2800, %v2805
    %v2808 = vunpack.c.l.s4 1934713408
    %v2809 = vunpack.c.0.s8 %v2808
    %v2810 = vperm.slane %v2802, %v2809
    %v2811 = vrot.slane %v2782, 4
    %v2812 = vsel %vm195, %v2811, %v2770
    %v2813 = vrot.slane %v2770, 4
    %v2814 = vsel %vm195, %v2782, %v2813
    %v2816 = vunpack.c.l.s4 1934713408
    %v2817 = vunpack.c.0.s8 %v2816
    %v2818 = vperm.slane %v2812, %v2817
    %v2820 = vunpack.c.l.s4 1934713408
    %v2821 = vunpack.c.0.s8 %v2820
    %v2822 = vperm.slane %v2814, %v2821
    %v2823 = vrot.slane %v2786, 4
    %v2824 = vsel %vm195, %v2823, %v2774
    %v2825 = vrot.slane %v2774, 4
    %v2826 = vsel %vm195, %v2786, %v2825
    %v2828 = vunpack.c.l.s4 1934713408
    %v2829 = vunpack.c.0.s8 %v2828
    %v2830 = vperm.slane %v2824, %v2829
    %v2832 = vunpack.c.l.s4 1934713408
    %v2833 = vunpack.c.0.s8 %v2832
    %v2834 = vperm.slane %v2826, %v2833
    %v2835 = vrot.slane %v2818, 4
    %v2836 = vsel %vm195, %v2835, %v2794
    %v2837 = vrot.slane %v2794, 4
    %v2838 = vsel %vm195, %v2818, %v2837
    %v2839 = vrot.slane %v2822, 4
    %v2840 = vsel %vm195, %v2839, %v2798
    %v2841 = vrot.slane %v2798, 4
    %v2842 = vsel %vm195, %v2822, %v2841
    %v2843 = vrot.slane %v2830, 4
    %v2844 = vsel %vm195, %v2843, %v2806
    %v2845 = vrot.slane %v2806, 4
    %v2846 = vsel %vm195, %v2830, %v2845
    %v2847 = vrot.slane %v2834, 4
    %v2848 = vsel %vm195, %v2847, %v2810
    %v2849 = vrot.slane %v2810, 4
    %v2850 = vsel %vm195, %v2834, %v2849
    %v2851 = vrot.slane %v2728, 4
    %v2852 = vsel %vm195, %v2851, %v2724
    %v2853 = vrot.slane %v2724, 4
    %v2854 = vsel %vm195, %v2728, %v2853
    %v2856 = vunpack.c.l.s4 1983009808
    %v2857 = vunpack.c.0.s8 %v2856
    %v2858 = vperm.slane %v2852, %v2857
    %v2860 = vunpack.c.l.s4 1983009808
    %v2861 = vunpack.c.0.s8 %v2860
    %v2862 = vperm.slane %v2854, %v2861
    %v2863 = vrot.slane %v2730, 4
    %v2864 = vsel %vm195, %v2863, %v2726
    %v2865 = vrot.slane %v2726, 4
    %v2866 = vsel %vm195, %v2730, %v2865
    %v2868 = vunpack.c.l.s4 1983009808
    %v2869 = vunpack.c.0.s8 %v2868
    %v2870 = vperm.slane %v2864, %v2869
    %v2872 = vunpack.c.l.s4 1983009808
    %v2873 = vunpack.c.0.s8 %v2872
    %v2874 = vperm.slane %v2866, %v2873
    %v2875 = vrot.slane %v2736, 4
    %v2876 = vsel %vm195, %v2875, %v2732
    %v2877 = vrot.slane %v2732, 4
    %v2878 = vsel %vm195, %v2736, %v2877
    %v2880 = vunpack.c.l.s4 1983009808
    %v2881 = vunpack.c.0.s8 %v2880
    %v2882 = vperm.slane %v2876, %v2881
    %v2884 = vunpack.c.l.s4 1983009808
    %v2885 = vunpack.c.0.s8 %v2884
    %v2886 = vperm.slane %v2878, %v2885
    %v2887 = vrot.slane %v2738, 4
    %v2888 = vsel %vm195, %v2887, %v2734
    %v2889 = vrot.slane %v2734, 4
    %v2890 = vsel %vm195, %v2738, %v2889
    %v2892 = vunpack.c.l.s4 1983009808
    %v2893 = vunpack.c.0.s8 %v2892
    %v2894 = vperm.slane %v2888, %v2893
    %v2896 = vunpack.c.l.s4 1983009808
    %v2897 = vunpack.c.0.s8 %v2896
    %v2898 = vperm.slane %v2890, %v2897
    %v2899 = vrot.slane %v2870, 4
    %v2900 = vsel %vm195, %v2899, %v2858
    %v2901 = vrot.slane %v2858, 4
    %v2902 = vsel %vm195, %v2870, %v2901
    %v2904 = vunpack.c.l.s4 1934713408
    %v2905 = vunpack.c.0.s8 %v2904
    %v2906 = vperm.slane %v2900, %v2905
    %v2908 = vunpack.c.l.s4 1934713408
    %v2909 = vunpack.c.0.s8 %v2908
    %v2910 = vperm.slane %v2902, %v2909
    %v2911 = vrot.slane %v2874, 4
    %v2912 = vsel %vm195, %v2911, %v2862
    %v2913 = vrot.slane %v2862, 4
    %v2914 = vsel %vm195, %v2874, %v2913
    %v2916 = vunpack.c.l.s4 1934713408
    %v2917 = vunpack.c.0.s8 %v2916
    %v2918 = vperm.slane %v2912, %v2917
    %v2920 = vunpack.c.l.s4 1934713408
    %v2921 = vunpack.c.0.s8 %v2920
    %v2922 = vperm.slane %v2914, %v2921
    %v2923 = vrot.slane %v2894, 4
    %v2924 = vsel %vm195, %v2923, %v2882
    %v2925 = vrot.slane %v2882, 4
    %v2926 = vsel %vm195, %v2894, %v2925
    %v2928 = vunpack.c.l.s4 1934713408
    %v2929 = vunpack.c.0.s8 %v2928
    %v2930 = vperm.slane %v2924, %v2929
    %v2932 = vunpack.c.l.s4 1934713408
    %v2933 = vunpack.c.0.s8 %v2932
    %v2934 = vperm.slane %v2926, %v2933
    %v2935 = vrot.slane %v2898, 4
    %v2936 = vsel %vm195, %v2935, %v2886
    %v2937 = vrot.slane %v2886, 4
    %v2938 = vsel %vm195, %v2898, %v2937
    %v2940 = vunpack.c.l.s4 1934713408
    %v2941 = vunpack.c.0.s8 %v2940
    %v2942 = vperm.slane %v2936, %v2941
    %v2944 = vunpack.c.l.s4 1934713408
    %v2945 = vunpack.c.0.s8 %v2944
    %v2946 = vperm.slane %v2938, %v2945
    %v2947 = vrot.slane %v2930, 4
    %v2948 = vsel %vm195, %v2947, %v2906
    %v2949 = vrot.slane %v2906, 4
    %v2950 = vsel %vm195, %v2930, %v2949
    %v2951 = vrot.slane %v2934, 4
    %v2952 = vsel %vm195, %v2951, %v2910
    %v2953 = vrot.slane %v2910, 4
    %v2954 = vsel %vm195, %v2934, %v2953
    %v2955 = vrot.slane %v2942, 4
    %v2956 = vsel %vm195, %v2955, %v2918
    %v2957 = vrot.slane %v2918, 4
    %v2958 = vsel %vm195, %v2942, %v2957
    %v2959 = vrot.slane %v2946, 4
    %v2960 = vsel %vm195, %v2959, %v2922
    %v2961 = vrot.slane %v2922, 4
    %v2962 = vsel %vm195, %v2946, %v2961
    %v2963 = vrot.slane %v2840, 4
    %v2964 = vsel %vm195, %v2963, %v2836
    %v2965 = vrot.slane %v2836, 4
    %v2966 = vsel %vm195, %v2840, %v2965
    %v2968 = vunpack.c.l.s4 1983009808
    %v2969 = vunpack.c.0.s8 %v2968
    %v2970 = vperm.slane %v2964, %v2969
    %v2972 = vunpack.c.l.s4 1983009808
    %v2973 = vunpack.c.0.s8 %v2972
    %v2974 = vperm.slane %v2966, %v2973
    %v2975 = vrot.slane %v2842, 4
    %v2976 = vsel %vm195, %v2975, %v2838
    %v2977 = vrot.slane %v2838, 4
    %v2978 = vsel %vm195, %v2842, %v2977
    %v2980 = vunpack.c.l.s4 1983009808
    %v2981 = vunpack.c.0.s8 %v2980
    %v2982 = vperm.slane %v2976, %v2981
    %v2984 = vunpack.c.l.s4 1983009808
    %v2985 = vunpack.c.0.s8 %v2984
    %v2986 = vperm.slane %v2978, %v2985
    %v2987 = vrot.slane %v2848, 4
    %v2988 = vsel %vm195, %v2987, %v2844
    %v2989 = vrot.slane %v2844, 4
    %v2990 = vsel %vm195, %v2848, %v2989
    %v2992 = vunpack.c.l.s4 1983009808
    %v2993 = vunpack.c.0.s8 %v2992
    %v2994 = vperm.slane %v2988, %v2993
    %v2996 = vunpack.c.l.s4 1983009808
    %v2997 = vunpack.c.0.s8 %v2996
    %v2998 = vperm.slane %v2990, %v2997
    %v2999 = vrot.slane %v2850, 4
    %v3000 = vsel %vm195, %v2999, %v2846
    %v3001 = vrot.slane %v2846, 4
    %v3002 = vsel %vm195, %v2850, %v3001
    %v3004 = vunpack.c.l.s4 1983009808
    %v3005 = vunpack.c.0.s8 %v3004
    %v3006 = vperm.slane %v3000, %v3005
    %v3008 = vunpack.c.l.s4 1983009808
    %v3009 = vunpack.c.0.s8 %v3008
    %v3010 = vperm.slane %v3002, %v3009
    %v3011 = vrot.slane %v2982, 4
    %v3012 = vsel %vm195, %v3011, %v2970
    %v3013 = vrot.slane %v2970, 4
    %v3014 = vsel %vm195, %v2982, %v3013
    %v3016 = vunpack.c.l.s4 1934713408
    %v3017 = vunpack.c.0.s8 %v3016
    %v3018 = vperm.slane %v3012, %v3017
    %v3020 = vunpack.c.l.s4 1934713408
    %v3021 = vunpack.c.0.s8 %v3020
    %v3022 = vperm.slane %v3014, %v3021
    %v3023 = vrot.slane %v2986, 4
    %v3024 = vsel %vm195, %v3023, %v2974
    %v3025 = vrot.slane %v2974, 4
    %v3026 = vsel %vm195, %v2986, %v3025
    %v3028 = vunpack.c.l.s4 1934713408
    %v3029 = vunpack.c.0.s8 %v3028
    %v3030 = vperm.slane %v3024, %v3029
    %v3032 = vunpack.c.l.s4 1934713408
    %v3033 = vunpack.c.0.s8 %v3032
    %v3034 = vperm.slane %v3026, %v3033
    %v3035 = vrot.slane %v3006, 4
    %v3036 = vsel %vm195, %v3035, %v2994
    %v3037 = vrot.slane %v2994, 4
    %v3038 = vsel %vm195, %v3006, %v3037
    %v3040 = vunpack.c.l.s4 1934713408
    %v3041 = vunpack.c.0.s8 %v3040
    %v3042 = vperm.slane %v3036, %v3041
    %v3044 = vunpack.c.l.s4 1934713408
    %v3045 = vunpack.c.0.s8 %v3044
    %v3046 = vperm.slane %v3038, %v3045
    %v3047 = vrot.slane %v3010, 4
    %v3048 = vsel %vm195, %v3047, %v2998
    %v3049 = vrot.slane %v2998, 4
    %v3050 = vsel %vm195, %v3010, %v3049
    %v3052 = vunpack.c.l.s4 1934713408
    %v3053 = vunpack.c.0.s8 %v3052
    %v3054 = vperm.slane %v3048, %v3053
    %v3056 = vunpack.c.l.s4 1934713408
    %v3057 = vunpack.c.0.s8 %v3056
    %v3058 = vperm.slane %v3050, %v3057
    %v3059 = vrot.slane %v3042, 4
    %v3060 = vsel %vm195, %v3059, %v3018
    %v3061 = vrot.slane %v3018, 4
    %v3062 = vsel %vm195, %v3042, %v3061
    %v3063 = vrot.slane %v3046, 4
    %v3064 = vsel %vm195, %v3063, %v3022
    %v3065 = vrot.slane %v3022, 4
    %v3066 = vsel %vm195, %v3046, %v3065
    %v3067 = vrot.slane %v3054, 4
    %v3068 = vsel %vm195, %v3067, %v3030
    %v3069 = vrot.slane %v3030, 4
    %v3070 = vsel %vm195, %v3054, %v3069
    %v3071 = vrot.slane %v3058, 4
    %v3072 = vsel %vm195, %v3071, %v3034
    %v3073 = vrot.slane %v3034, 4
    %v3074 = vsel %vm195, %v3058, %v3073
    %3077 = vrot.lane.b32.xlu0 %v2950, 4
    %v3078 = vpop.permute.xlu0 %3077
    %3079 = vrot.lane.b32.xlu0 %v3062, 4
    %v3080 = vpop.permute.xlu0 %3079
    %3085 = vrot.lane.b32.xlu0 %v2952, 8
    %v3086 = vpop.permute.xlu0 %3085
    %3087 = vrot.lane.b32.xlu0 %v3064, 8
    %v3088 = vpop.permute.xlu0 %3087
    %3093 = vrot.lane.b32.xlu0 %v2954, 12
    %v3094 = vpop.permute.xlu0 %3093
    %3095 = vrot.lane.b32.xlu0 %v3066, 12
    %v3096 = vpop.permute.xlu0 %3095
    %3101 = vrot.lane.b32.xlu0 %v2956, 16
    %v3102 = vpop.permute.xlu0 %3101
    %3103 = vrot.lane.b32.xlu0 %v3068, 16
    %v3104 = vpop.permute.xlu0 %3103
    %3109 = vrot.lane.b32.xlu0 %v2958, 20
    %v3110 = vpop.permute.xlu0 %3109
    %3111 = vrot.lane.b32.xlu0 %v3070, 20
    %v3112 = vpop.permute.xlu0 %3111
    %3117 = vrot.lane.b32.xlu0 %v2960, 24
    %v3118 = vpop.permute.xlu0 %3117
    %3119 = vrot.lane.b32.xlu0 %v3072, 24
    %v3120 = vpop.permute.xlu0 %3119
    %3125 = vrot.lane.b32.xlu0 %v2962, 28
    %v3126 = vpop.permute.xlu0 %3125
    %3127 = vrot.lane.b32.xlu0 %v3074, 28
    %v3128 = vpop.permute.xlu0 %3127
    %v3131 = vsel %vm1665, %v2948, %v3078
    %v3132 = vsel %vm1665, %v3060, %v3080
    %v3133 = vsel %vm2082, %v3131, %v3086
    %v3134 = vsel %vm2082, %v3132, %v3088
    %vm3135 = vcmask 97280
    %v3136 = vsel %vm3135, %v3133, %v3094
    %v3137 = vsel %vm3135, %v3134, %v3096
    %vm3138 = vcmask 130048
    %v3139 = vsel %vm3138, %v3136, %v3102
    %v3140 = vsel %vm3138, %v3137, %v3104
    %vm3141 = vcmask 162816
    %v3142 = vsel %vm3141, %v3139, %v3110
    %v3143 = vsel %vm3141, %v3140, %v3112
    %vm3144 = vcmask 195584
    %v3145 = vsel %vm3144, %v3142, %v3118
    %v3146 = vsel %vm3144, %v3143, %v3120
    %vm3147 = vcmask 228352
    %v3148 = vsel %vm3147, %v3145, %v3126
    %v3149 = vsel %vm3147, %v3146, %v3128
    %v3150 = vld [vmem:[%s3] sm:$0xff]
    %v3151 = vld [vmem:[%s3 + $0x8] sm:$0xff]
    %v3152 = vld [vmem:[%s3 + $0x10] sm:$0xff]
    %v3153 = vld [vmem:[%s3 + $0x18] sm:$0xff]
    %v3154 = vld [vmem:[%s4] sm:$0x1]
    %v3156 = vperm.slane %v3154, 0
    %v3159 = vsel %vm49, %v3148, 0
    %v3162 = vsel %vm49, %v3149, 0
    %3164 = vmatpush.msra.mxu0 0.0
    %3165 = vmatpush.msra.mxu0 0.0
    %3166 = vmatpush.msra.mxu0 0.0
    %3167 = vmatpush.msra.mxu0 0.0
    %3168 = vmatpush.msra.mxu0 0.0
    %3169 = vmatpush.msra.mxu0 0.0
    %3170 = vmatpush.msra.mxu0 0.0
    %3171 = vmatpush.msra.mxu0 0.0
    %3172 = vmatpush.msra.mxu0 0.0
    %3173 = vmatpush.msra.mxu0 0.0
    %3174 = vmatpush.msra.mxu0 0.0
    %3175 = vmatpush.msra.mxu0 0.0
    %3176 = vmatpush.msra.mxu0 %v3153
    %3177 = vmatpush.msra.mxu0 %v3152
    %3178 = vmatpush.msra.mxu0 %v3151
    %3179 = vmatpush.msra.mxu0 %v3150
    %3180 = vmatmul.f32.gmra.mxu0 %v3159
    %v3181 = vpop.f32.mrf.mxu0
    %v3182 = vadd.f32 %v3156, %v3181
    %3183 = vmatmul.f32.gmra.mxu0 %v3162
    %v3184 = vpop.f32.mrf.mxu0
    %v3185 = vadd.f32 %v3156, %v3184
    %3186 = vdwg.mxu0
    %v3187 = vadd.f32 %v45, %v3182
    %v3188 = vadd.f32 %v46, %v3185
    %v3189 = vld [vmem:[%s11] sm:$0x1]
    %v3190 = vld [vmem:[%s12] sm:$0x1]
    %v3191 = vsel %vm49, %v3187, 0.0
    %3192 = vadd.xlane.f32.xlu0 %v3191
    %v3193 = vpop.xlane.xlu0 %3192
    %v3194 = vsel %vm49, %v3188, 0.0
    %3195 = vadd.xlane.f32.xlu0 %v3194
    %v3196 = vpop.xlane.xlu0 %3195
    %v3197 = vmul.f32 %v3193, %v62
    %v3198 = vmul.f32 %v3196, %v62
    %v3199 = vsub.f32 %v3187, %v3197
    %v3200 = vsub.f32 %v3188, %v3198
    %v3201 = vmul.f32 %v3199, %v3199
    %v3202 = vmul.f32 %v3200, %v3200
    %v3203 = vsel %vm49, %v3201, 0.0
    %3204 = vadd.xlane.f32.xlu0 %v3203
    %v3205 = vpop.xlane.xlu0 %3204
    %v3206 = vsel %vm49, %v3202, 0.0
    %3207 = vadd.xlane.f32.xlu0 %v3206
    %v3208 = vpop.xlane.xlu0 %3207
    %v3209 = vmul.f32 %v3205, %v62
    %v3210 = vmul.f32 %v3208, %v62
    %v3211 = vadd.f32 %v3209, 1e-05
    %v3212 = vadd.f32 %v3210, 1e-05
    %v3213 = vrsqrt.pop %v3211
    %v3214 = vmul.f32 %v3213, %v3211
    %v3215 = vmul.f32 %v3214, %v3213
    %v3216 = vmul.f32 0.5, %v3215
    %v3217 = vsub.f32 1.5, %v3216
    %v3218 = vmul.f32 %v3213, %v3217
    %vm3219 = vweird.f32 %v3211
    %vm3220 = vweird.f32 %v3213
    %vm3221 = vmor %vm3219, %vm3220
    %v3222 = vsel %vm3221, %v3213, %v3218
    %v3223 = vrsqrt.pop %v3212
    %v3224 = vmul.f32 %v3223, %v3212
    %v3225 = vmul.f32 %v3224, %v3223
    %v3226 = vmul.f32 0.5, %v3225
    %v3227 = vsub.f32 1.5, %v3226
    %v3228 = vmul.f32 %v3223, %v3227
    %vm3229 = vweird.f32 %v3212
    %vm3230 = vweird.f32 %v3223
    %vm3231 = vmor %vm3229, %vm3230
    %v3232 = vsel %vm3231, %v3223, %v3228
    %v3233 = vmul.f32 %v3199, %v3222
    %v3234 = vmul.f32 %v3200, %v3232
    %v3236 = vperm.slane %v3189, 0
    %v3238 = vmul.f32 %v3233, %v3236
    %v3239 = vmul.f32 %v3234, %v3236
    %v3241 = vperm.slane %v3190, 0
    %v3243 = vadd.f32 %v3238, %v3241
    %v3244 = vadd.f32 %v3239, %v3241
    %v3245 = vld [vmem:[%s7] sm:$0xff]
    %v3246 = vld [vmem:[%s7 + $0x8] sm:$0xff]
    %v3247 = vld [vmem:[%s7 + $0x10] sm:$0xff]
    %v3248 = vld [vmem:[%s7 + $0x18] sm:$0xff]
    %v3249 = vld [vmem:[%s8] sm:$0x1]
    %v3251 = vperm.slane %v3249, 0
    %v3254 = vsel %vm49, %v3243, 0
    %v3257 = vsel %vm49, %v3244, 0
    %3259 = vmatpush.msra.mxu0 0.0
    %3260 = vmatpush.msra.mxu0 0.0
    %3261 = vmatpush.msra.mxu0 0.0
    %3262 = vmatpush.msra.mxu0 0.0
    %3263 = vmatpush.msra.mxu0 0.0
    %3264 = vmatpush.msra.mxu0 0.0
    %3265 = vmatpush.msra.mxu0 0.0
    %3266 = vmatpush.msra.mxu0 0.0
    %3267 = vmatpush.msra.mxu0 0.0
    %3268 = vmatpush.msra.mxu0 0.0
    %3269 = vmatpush.msra.mxu0 0.0
    %3270 = vmatpush.msra.mxu0 0.0
    %3271 = vmatpush.msra.mxu0 %v3248
    %3272 = vmatpush.msra.mxu0 %v3247
    %3273 = vmatpush.msra.mxu0 %v3246
    %3274 = vmatpush.msra.mxu0 %v3245
    %3275 = vmatmul.f32.gmra.mxu0 %v3254
    %v3276 = vpop.f32.mrf.mxu0
    %v3277 = vadd.f32 %v3251, %v3276
    %3278 = vmatmul.f32.gmra.mxu0 %v3257
    %v3279 = vpop.f32.mrf.mxu0
    %v3280 = vadd.f32 %v3251, %v3279
    %3281 = vdwg.mxu0
    %v3282 = vmax.f32 %v3277, 0.0
    %v3283 = vmax.f32 %v3280, 0.0
    %v3284 = vld [vmem:[%s9] sm:$0xff]
    %v3285 = vld [vmem:[%s9 + $0x8] sm:$0xff]
    %v3286 = vld [vmem:[%s9 + $0x10] sm:$0xff]
    %v3287 = vld [vmem:[%s9 + $0x18] sm:$0xff]
    %v3288 = vld [vmem:[%s9 + $0x20] sm:$0xff]
    %v3289 = vld [vmem:[%s9 + $0x28] sm:$0xff]
    %v3290 = vld [vmem:[%s9 + $0x30] sm:$0xff]
    %v3291 = vld [vmem:[%s9 + $0x38] sm:$0xff]
    %v3292 = vld [vmem:[%s9 + $0x40] sm:$0xff]
    %v3293 = vld [vmem:[%s9 + $0x48] sm:$0xff]
    %v3294 = vld [vmem:[%s9 + $0x50] sm:$0xff]
    %v3295 = vld [vmem:[%s9 + $0x58] sm:$0xff]
    %v3296 = vld [vmem:[%s9 + $0x60] sm:$0xff]
    %v3297 = vld [vmem:[%s9 + $0x68] sm:$0xff]
    %v3298 = vld [vmem:[%s9 + $0x70] sm:$0xff]
    %v3299 = vld [vmem:[%s9 + $0x78] sm:$0xff]
    %v3300 = vld [vmem:[%s10] sm:$0x1]
    %v3302 = vperm.slane %v3300, 0
    %3304 = vmatpush.msra.mxu0 %v3299
    %3305 = vmatpush.msra.mxu0 %v3298
    %3306 = vmatpush.msra.mxu0 %v3297
    %3307 = vmatpush.msra.mxu0 %v3296
    %3308 = vmatpush.msra.mxu0 %v3295
    %3309 = vmatpush.msra.mxu0 %v3294
    %3310 = vmatpush.msra.mxu0 %v3293
    %3311 = vmatpush.msra.mxu0 %v3292
    %3312 = vmatpush.msra.mxu0 %v3291
    %3313 = vmatpush.msra.mxu0 %v3290
    %3314 = vmatpush.msra.mxu0 %v3289
    %3315 = vmatpush.msra.mxu0 %v3288
    %3316 = vmatpush.msra.mxu0 %v3287
    %3317 = vmatpush.msra.mxu0 %v3286
    %3318 = vmatpush.msra.mxu0 %v3285
    %3319 = vmatpush.msra.mxu0 %v3284
    %3320 = vmatmul.f32.gmra.mxu0 %v3282
    %v3321 = vpop.f32.mrf.mxu0
    %v3322 = vadd.f32 %v3302, %v3321
    %3323 = vmatmul.f32.gmra.mxu0 %v3283
    %v3324 = vpop.f32.mrf.mxu0
    %v3325 = vadd.f32 %v3302, %v3324
    %3326 = vdwg.mxu0
    %v3327 = vadd.f32 %v3187, %v3322
    %v3328 = vadd.f32 %v3188, %v3325
    %3329 = vst.msk [vmem:[#allocation2] sm:$0xff] %vm49, %v3327
    %3330 = vst.msk [vmem:[#allocation2 + $0x8] sm:$0xff] %vm49, %v3328
    // Predicated region
    $region54: #{tpu_custom_call.1} parent=1 // pred_check
      _
    $region55: #{tpu_custom_call.1} parent=1 // pred_check_branch
      %3332 = sbr.rel (0) target = $region57
    $region56: #{tpu_custom_call.1} parent=1 // pred_region
      %3334 = vsyncadd [#allocation3], 0
      %s3335 = sshll.u32 [#allocation2], 4
      %s3336 = int_to_ptr.vmem [resolvable:$true] %s3335
      %s3337 = sshll.u32 %s13, 4
      %s3338 = int_to_ptr.hbm [resolvable:$true] %s3337
      %3343 = dma.vmem_to_hbm [thread:$0]  %s3336, 256, %s3338, [#allocation3], 128, 128, 8
    $region57: #{tpu_custom_call.1} parent=1 // pred_fallthru
      _
    // Predicated region
    $region58: #{tpu_custom_call.1} parent=1 // pred_check
      _
    $region59: #{tpu_custom_call.1} parent=1 // pred_check_branch
      %3345 = sbr.rel (0) target = $region61
    $region60: #{tpu_custom_call.1} parent=1 // pred_region
      %3347 = dma.done [#allocation3], 256
    $region61: #{tpu_custom_call.1} parent=1 // pred_fallthru
      _
    %3348 = vsyncpa [#allocation3], 1

</llo_original>
